<compile_context>
chip_gen: v7x
topology: tpu7x:2x2x1
jax: 0.10.0
libtpu: 0.0.40
codegen_flags: <defaults>
</compile_context>

<pallas_src>
import functools
import math

import jax
import jax.numpy as jnp
from jax.experimental import pallas as pl
from jax.experimental.pallas import tpu as pltpu


def _round_up(x, m):
    return ((x + m - 1) // m) * m


def _pick_batch_block(batch, n_q, target_rows=256):
    """Smallest divisor of `batch` whose flattened row slab fills the MXU M dim.

    Prioritizes MXU row fill; for tiny batches this can collapse the grid to a
    single step (on v7x you may prefer b_block=batch//2 to keep both TCs busy).
    """
    for d in range(1, batch + 1):
        if batch % d == 0 and d * n_q >= target_rows:
            return d
    return batch


def cross_attention_kernel(x_ref, ctx_ref, wq_ref, wk_ref, wv_ref, wo_ref,
                           bo_ref, o_ref, hout_ref, *, b_blk, heads, dim_head,
                           scale):
    n_q = x_ref.shape[1]
    n_ctx = ctx_ref.shape[1]
    q_dim = x_ref.shape[2]
    c_dim = ctx_ref.shape[2]
    q_pad = o_ref.shape[2]

    # Flatten the batch block into a single row slab for the projections.
    x = x_ref[...].reshape(b_blk * n_q, q_dim)        # (rows_q, query_dim)
    ctx = ctx_ref[...].reshape(b_blk * n_ctx, c_dim)  # (rows_kv, context_dim)
    cdt = x.dtype

    # QKV projections: MXU matmuls with f32 accumulation; the softmax scale is
    # folded into q once here (instead of scaling every score block).
    q = (jnp.dot(x, wq_ref[...], preferred_element_type=jnp.float32)
         * scale).astype(cdt)
    k = jnp.dot(ctx, wk_ref[...], preferred_element_type=jnp.float32).astype(cdt)
    v = jnp.dot(ctx, wv_ref[...], preferred_element_type=jnp.float32).astype(cdt)

    # Attention per (batch-element, head); results land lane-contiguously in
    # the (rows_q, inner) VMEM scratch so the output projection is one matmul.
    for b in range(b_blk):                       # short static loops
        qr = slice(b * n_q, (b + 1) * n_q)
        kr = slice(b * n_ctx, (b + 1) * n_ctx)
        for h in range(heads):
            lo = h * dim_head
            hs = slice(lo, lo + dim_head)
            qh = q[qr, hs]                       # (n_q,  d)
            kh = k[kr, hs]                       # (n_ctx, d)
            vh = v[kr, hs]                       # (n_ctx, d)

            # scores (scale already folded into q), f32.
            dots = jax.lax.dot_general(
                qh, kh, (((1,), (1,)), ((), ())),
                preferred_element_type=jnp.float32)       # (n_q, n_ctx)

            # Numerically stable softmax with deferred normalization.
            m = jnp.max(dots, axis=-1, keepdims=True)     # XLU
            p = jnp.exp(dots - m)                         # EUP
            s = jnp.sum(p, axis=-1, keepdims=True)        # XLU

            out_un = jnp.dot(p.astype(cdt), vh,
                             preferred_element_type=jnp.float32)  # (n_q, d)
            out_h = out_un * pl.reciprocal(s, approx=True)        # EUP recip

            hout_ref[qr, hs] = out_h.astype(cdt)

    # Single fused output projection + bias over the whole row slab.
    out = jnp.dot(hout_ref[...], wo_ref[...],
                  preferred_element_type=jnp.float32)     # (rows_q, q_pad)
    out = out + bo_ref[...].astype(jnp.float32)           # broadcast bias
    o_ref[...] = out.reshape(b_blk, n_q, q_pad).astype(o_ref.dtype)


def cross_attention_pallas(x, wq, wk, wv, wo, bo, *, context=None,
                           heads, dim_head, b_block=None):
    """x: (batch, n_q, query_dim) -> (out: (batch, n_q, query_dim), None)."""
    if context is None:
        context = x
    batch, n_q, query_dim = x.shape
    ctx_batch, n_ctx, context_dim = context.shape
    assert ctx_batch == batch
    inner = heads * dim_head
    assert wq.shape == (query_dim, inner)
    assert wk.shape == (context_dim, inner)
    assert wv.shape == (context_dim, inner)
    assert wo.shape == (inner, query_dim)
    assert bo.shape == (query_dim,)
    scale = dim_head ** (-0.5)

    if b_block is None:
        b_block = _pick_batch_block(batch, n_q)
    assert batch % b_block == 0, "b_block must divide batch"
    grid = (batch // b_block,)

    # Lane-dense output: pad the projection's output dim to a multiple of 128
    # (unmasked vector stores); the wrapper slices the padding back off.
    q_pad = _round_up(query_dim, 128)
    if q_pad != query_dim:
        wo_p = jnp.pad(wo, ((0, 0), (0, q_pad - query_dim)))
        bo_p = jnp.pad(bo, (0, q_pad - query_dim))
    else:
        wo_p, bo_p = wo, bo
    bo2 = bo_p.reshape(1, q_pad)

    # VMEM budget: ~75% of the chip's capacity, capped at 100 MiB
    # (~48 MiB on v7x, ~96 MiB on v5e/v6e).
    try:
        vmem_cap = pltpu.get_tpu_info().vmem_capacity_bytes
    except Exception:  # pragma: no cover - conservative fallback
        vmem_cap = 128 * 1024 * 1024
    vmem_limit = min(int(0.75 * vmem_cap), 100 * 1024 * 1024)

    kernel = functools.partial(cross_attention_kernel, b_blk=b_block,
                               heads=heads, dim_head=dim_head, scale=scale)

    out = pl.pallas_call(
        kernel,
        out_shape=jax.ShapeDtypeStruct((batch, n_q, q_pad), x.dtype),
        grid_spec=pltpu.PrefetchScalarGridSpec(
            num_scalar_prefetch=0,
            grid=grid,
            in_specs=[
                pl.BlockSpec((b_block, n_q, query_dim),
                             lambda b: (b, 0, 0)),                     # x
                pl.BlockSpec((b_block, n_ctx, context_dim),
                             lambda b: (b, 0, 0)),                     # context
                pl.BlockSpec((query_dim, inner), lambda b: (0, 0),
                             pipeline_mode=pl.Buffered(1)),            # Wq
                pl.BlockSpec((context_dim, inner), lambda b: (0, 0),
                             pipeline_mode=pl.Buffered(1)),            # Wk
                pl.BlockSpec((context_dim, inner), lambda b: (0, 0),
                             pipeline_mode=pl.Buffered(1)),            # Wv
                pl.BlockSpec((inner, q_pad), lambda b: (0, 0),
                             pipeline_mode=pl.Buffered(1)),            # Wo
                pl.BlockSpec((1, q_pad), lambda b: (0, 0),
                             pipeline_mode=pl.Buffered(1)),            # bo
            ],
            out_specs=pl.BlockSpec((b_block, n_q, q_pad),
                                   lambda b: (b, 0, 0)),
            scratch_shapes=[
                pltpu.VMEM((b_block * n_q, inner), x.dtype),  # per-head outputs
            ],
        ),
        compiler_params=pltpu.CompilerParams(
            dimension_semantics=("parallel",),   # batch blocks shard across TCs
            vmem_limit_bytes=vmem_limit,
        ),
    )(x, context, wq, wk, wv, wo_p, bo2)

    if q_pad != query_dim:
        out = out[..., :query_dim]

    # Mirrors the module's (output, attention) tuple; attn weights not returned.
    return out, None


def reference_cross_attention(x, context, wq, wk, wv, wo, bo, *, heads, dim_head):
    """Pure-JAX mirror of the PyTorch forward (mask=None)."""
    scale = dim_head ** (-0.5)
    b, n, _ = x.shape
    m = context.shape[1]
    q = jnp.einsum("bnd,di->bni", x, wq)
    k = jnp.einsum("bmd,di->bmi", context, wk)
    v = jnp.einsum("bmd,di->bmi", context, wv)
    q = q.reshape(b, n, heads, dim_head).transpose(0, 2, 1, 3)
    k = k.reshape(b, m, heads, dim_head).transpose(0, 2, 1, 3)
    v = v.reshape(b, m, heads, dim_head).transpose(0, 2, 1, 3)
    dots = jnp.einsum("bhid,bhjd->bhij", q, k) * scale
    attn = jax.nn.softmax(dots, axis=-1)
    out = jnp.einsum("bhij,bhjd->bhid", attn, v)
    out = out.transpose(0, 2, 1, 3).reshape(b, n, heads * dim_head)
    return jnp.einsum("bni,io->bno", out, wo) + bo


if __name__ == "__main__":
    # Small demo shapes consistent with the module's constructor args.
    # (dim_head=128 keeps per-head lane slices aligned to the 128-wide vreg;
    #  the kernel works for other values.)
    batch, n_q, n_ctx = 2, 8, 16
    query_dim, context_dim = 32, 32
    heads, dim_head = 4, 128
    inner = heads * dim_head

    key = jax.random.PRNGKey(0)
    kx, kc, kq, kk, kv, kw, kb = jax.random.split(key, 7)

    x = jax.random.normal(kx, (batch, n_q, query_dim), dtype=jnp.float32)
    context = jax.random.normal(kc, (batch, n_ctx, context_dim), dtype=jnp.float32)

    # nn.Linear-style uniform(-1/sqrt(fan_in), 1/sqrt(fan_in)) init.
    lim_q = 1.0 / math.sqrt(query_dim)
    lim_c = 1.0 / math.sqrt(context_dim)
    lim_o = 1.0 / math.sqrt(inner)
    wq = jax.random.uniform(kq, (query_dim, inner), minval=-lim_q, maxval=lim_q,
                            dtype=jnp.float32)
    wk = jax.random.uniform(kk, (context_dim, inner), minval=-lim_c, maxval=lim_c,
                            dtype=jnp.float32)
    wv = jax.random.uniform(kv, (context_dim, inner), minval=-lim_c, maxval=lim_c,
                            dtype=jnp.float32)
    wo = jax.random.uniform(kw, (inner, query_dim), minval=-lim_o, maxval=lim_o,
                            dtype=jnp.float32)
    bo = jax.random.uniform(kb, (query_dim,), minval=-lim_o, maxval=lim_o,
                            dtype=jnp.float32)

    out, attn = cross_attention_pallas(x, wq, wk, wv, wo, bo, context=context,
                                       heads=heads, dim_head=dim_head)
    out = jax.block_until_ready(out)

    ref = reference_cross_attention(x, context, wq, wk, wv, wo, bo,
                                    heads=heads, dim_head=dim_head)
    assert out.shape == (batch, n_q, query_dim)
    assert attn is None
    # Slightly loosened tolerance: the softmax denominator uses the EUP
    # approximate reciprocal (pl.reciprocal(..., approx=True)).
    assert jnp.allclose(out, ref, atol=2e-3, rtol=2e-3), "mismatch vs reference"

    print("KERNEL_OK")
</pallas_src>

<mosaic_0001>
module attributes {stable_mosaic.version = 11 : i64} {
  func.func @cross_attention_kernel(%arg0: i32, %arg1: memref<2x8x32xf32, #tpu.memory_space<vmem>>, %arg2: memref<2x16x32xf32, #tpu.memory_space<vmem>>, %arg3: memref<32x512xf32, #tpu.memory_space<vmem>>, %arg4: memref<32x512xf32, #tpu.memory_space<vmem>>, %arg5: memref<32x512xf32, #tpu.memory_space<vmem>>, %arg6: memref<512x128xf32, #tpu.memory_space<vmem>>, %arg7: memref<1x128xf32, #tpu.memory_space<vmem>>, %arg8: memref<2x8x128xf32, #tpu.memory_space<vmem>>, %arg9: memref<16x512xf32, #tpu.memory_space<vmem>>) attributes {dimension_semantics = [#tpu.dimension_semantics<parallel>], iteration_bounds = array<i64: 1>, scalar_prefetch = 0 : i64, scratch_operands = 1 : i64, tpu.core_type = #tpu.core_type<tc>, window_params = [{transform_indices = @transform_0, window_bounds = array<i64: 2, 8, 32>}, {transform_indices = @transform_1, window_bounds = array<i64: 2, 16, 32>}, {pipeline_mode = #tpu.pipeline_mode<synchronous>, transform_indices = @transform_2, window_bounds = array<i64: 32, 512>}, {pipeline_mode = #tpu.pipeline_mode<synchronous>, transform_indices = @transform_3, window_bounds = array<i64: 32, 512>}, {pipeline_mode = #tpu.pipeline_mode<synchronous>, transform_indices = @transform_4, window_bounds = array<i64: 32, 512>}, {pipeline_mode = #tpu.pipeline_mode<synchronous>, transform_indices = @transform_5, window_bounds = array<i64: 512, 128>}, {pipeline_mode = #tpu.pipeline_mode<synchronous>, transform_indices = @transform_6, window_bounds = array<i64: 1, 128>}, {transform_indices = @transform_7, window_bounds = array<i64: 2, 8, 128>}]} {
    %c0 = arith.constant 0 : index
    %c0_0 = arith.constant 0 : index
    %c0_1 = arith.constant 0 : index
    %0 = vector.load %arg1[%c0, %c0_0, %c0_1] : memref<2x8x32xf32, #tpu.memory_space<vmem>>, vector<2x8x32xf32>
    %1 = vector.shape_cast %0 : vector<2x8x32xf32> to vector<16x32xf32>
    %c0_2 = arith.constant 0 : index
    %c0_3 = arith.constant 0 : index
    %c0_4 = arith.constant 0 : index
    %2 = vector.load %arg2[%c0_2, %c0_3, %c0_4] : memref<2x16x32xf32, #tpu.memory_space<vmem>>, vector<2x16x32xf32>
    %3 = vector.shape_cast %2 : vector<2x16x32xf32> to vector<32x32xf32>
    %c0_5 = arith.constant 0 : index
    %c0_6 = arith.constant 0 : index
    %4 = vector.load %arg3[%c0_5, %c0_6] : memref<32x512xf32, #tpu.memory_space<vmem>>, vector<32x512xf32>
    %cst = arith.constant dense<0.000000e+00> : vector<16x512xf32>
    %5 = tpu.matmul %1, %4, %cst {dimension_numbers = #tpu.dot_dimension_numbers<[1], [0], [0], [1], [0, 0, 1, 1], [], []>} : vector<16x32xf32>, vector<32x512xf32>, vector<16x512xf32> -> vector<16x512xf32>
    %cst_7 = arith.constant 0.0883883461 : f32
    %6 = vector.broadcast %cst_7 : f32 to vector<16x512xf32>
    %7 = arith.mulf %5, %6 : vector<16x512xf32>
    %c0_8 = arith.constant 0 : index
    %c0_9 = arith.constant 0 : index
    %8 = vector.load %arg4[%c0_8, %c0_9] : memref<32x512xf32, #tpu.memory_space<vmem>>, vector<32x512xf32>
    %cst_10 = arith.constant dense<0.000000e+00> : vector<32x512xf32>
    %9 = tpu.matmul %3, %8, %cst_10 {dimension_numbers = #tpu.dot_dimension_numbers<[1], [0], [0], [1], [0, 0, 1, 1], [], []>} : vector<32x32xf32>, vector<32x512xf32>, vector<32x512xf32> -> vector<32x512xf32>
    %c0_11 = arith.constant 0 : index
    %c0_12 = arith.constant 0 : index
    %10 = vector.load %arg5[%c0_11, %c0_12] : memref<32x512xf32, #tpu.memory_space<vmem>>, vector<32x512xf32>
    %cst_13 = arith.constant dense<0.000000e+00> : vector<32x512xf32>
    %11 = tpu.matmul %3, %10, %cst_13 {dimension_numbers = #tpu.dot_dimension_numbers<[1], [0], [0], [1], [0, 0, 1, 1], [], []>} : vector<32x32xf32>, vector<32x512xf32>, vector<32x512xf32> -> vector<32x512xf32>
    %12 = vector.extract_strided_slice %7 {offsets = [0, 0], sizes = [8, 128], strides = [1, 1]} : vector<16x512xf32> to vector<8x128xf32>
    %13 = vector.extract_strided_slice %9 {offsets = [0, 0], sizes = [16, 128], strides = [1, 1]} : vector<32x512xf32> to vector<16x128xf32>
    %14 = vector.extract_strided_slice %11 {offsets = [0, 0], sizes = [16, 128], strides = [1, 1]} : vector<32x512xf32> to vector<16x128xf32>
    %cst_14 = arith.constant dense<0.000000e+00> : vector<8x16xf32>
    %15 = tpu.matmul %12, %13, %cst_14 {dimension_numbers = #tpu.dot_dimension_numbers<[1], [1], [0], [0], [0, 0, 1, 0], [], []>} : vector<8x128xf32>, vector<16x128xf32>, vector<8x16xf32> -> vector<8x16xf32>
    %cst_15 = arith.constant dense<0xFF800000> : vector<8xf32>
    %16 = vector.multi_reduction <maximumf>, %15, %cst_15 [1] : vector<8x16xf32> to vector<8xf32>
    %17 = vector.shape_cast %16 : vector<8xf32> to vector<8x1xf32>
    %18 = vector.broadcast %17 : vector<8x1xf32> to vector<8x16xf32>
    %19 = arith.subf %15, %18 : vector<8x16xf32>
    %20 = math.exp %19 : vector<8x16xf32>
    %cst_16 = arith.constant dense<0.000000e+00> : vector<8xf32>
    %21 = vector.multi_reduction <add>, %20, %cst_16 [1] : vector<8x16xf32> to vector<8xf32>
    %22 = vector.shape_cast %21 : vector<8xf32> to vector<8x1xf32>
    %cst_17 = arith.constant dense<0.000000e+00> : vector<8x128xf32>
    %23 = tpu.matmul %20, %14, %cst_17 {dimension_numbers = #tpu.dot_dimension_numbers<[1], [0], [0], [1], [0, 0, 1, 1], [], []>} : vector<8x16xf32>, vector<16x128xf32>, vector<8x128xf32> -> vector<8x128xf32>
    %24 = tpu.reciprocal %22 {approx = true} : vector<8x1xf32> -> vector<8x1xf32>
    %25 = vector.broadcast %24 : vector<8x1xf32> to vector<8x128xf32>
    %26 = arith.mulf %23, %25 : vector<8x128xf32>
    %c0_18 = arith.constant 0 : index
    %c0_19 = arith.constant 0 : index
    %27 = vector.load %arg9[%c0_18, %c0_19] : memref<16x512xf32, #tpu.memory_space<vmem>>, vector<8x128xf32>
    tpu.vector_store %arg9[%c0_18, %c0_19], %26 {strides = array<i32>} : memref<16x512xf32, #tpu.memory_space<vmem>>, vector<8x128xf32>,
    %28 = vector.extract_strided_slice %7 {offsets = [0, 128], sizes = [8, 128], strides = [1, 1]} : vector<16x512xf32> to vector<8x128xf32>
    %29 = vector.extract_strided_slice %9 {offsets = [0, 128], sizes = [16, 128], strides = [1, 1]} : vector<32x512xf32> to vector<16x128xf32>
    %30 = vector.extract_strided_slice %11 {offsets = [0, 128], sizes = [16, 128], strides = [1, 1]} : vector<32x512xf32> to vector<16x128xf32>
    %cst_20 = arith.constant dense<0.000000e+00> : vector<8x16xf32>
    %31 = tpu.matmul %28, %29, %cst_20 {dimension_numbers = #tpu.dot_dimension_numbers<[1], [1], [0], [0], [0, 0, 1, 0], [], []>} : vector<8x128xf32>, vector<16x128xf32>, vector<8x16xf32> -> vector<8x16xf32>
    %cst_21 = arith.constant dense<0xFF800000> : vector<8xf32>
    %32 = vector.multi_reduction <maximumf>, %31, %cst_21 [1] : vector<8x16xf32> to vector<8xf32>
    %33 = vector.shape_cast %32 : vector<8xf32> to vector<8x1xf32>
    %34 = vector.broadcast %33 : vector<8x1xf32> to vector<8x16xf32>
    %35 = arith.subf %31, %34 : vector<8x16xf32>
    %36 = math.exp %35 : vector<8x16xf32>
    %cst_22 = arith.constant dense<0.000000e+00> : vector<8xf32>
    %37 = vector.multi_reduction <add>, %36, %cst_22 [1] : vector<8x16xf32> to vector<8xf32>
    %38 = vector.shape_cast %37 : vector<8xf32> to vector<8x1xf32>
    %cst_23 = arith.constant dense<0.000000e+00> : vector<8x128xf32>
    %39 = tpu.matmul %36, %30, %cst_23 {dimension_numbers = #tpu.dot_dimension_numbers<[1], [0], [0], [1], [0, 0, 1, 1], [], []>} : vector<8x16xf32>, vector<16x128xf32>, vector<8x128xf32> -> vector<8x128xf32>
    %40 = tpu.reciprocal %38 {approx = true} : vector<8x1xf32> -> vector<8x1xf32>
    %41 = vector.broadcast %40 : vector<8x1xf32> to vector<8x128xf32>
    %42 = arith.mulf %39, %41 : vector<8x128xf32>
    %c0_24 = arith.constant 0 : index
    %c128 = arith.constant 128 : index
    %43 = vector.load %arg9[%c0_24, %c128] : memref<16x512xf32, #tpu.memory_space<vmem>>, vector<8x128xf32>
    tpu.vector_store %arg9[%c0_24, %c128], %42 {strides = array<i32>} : memref<16x512xf32, #tpu.memory_space<vmem>>, vector<8x128xf32>,
    %44 = vector.extract_strided_slice %7 {offsets = [0, 256], sizes = [8, 128], strides = [1, 1]} : vector<16x512xf32> to vector<8x128xf32>
    %45 = vector.extract_strided_slice %9 {offsets = [0, 256], sizes = [16, 128], strides = [1, 1]} : vector<32x512xf32> to vector<16x128xf32>
    %46 = vector.extract_strided_slice %11 {offsets = [0, 256], sizes = [16, 128], strides = [1, 1]} : vector<32x512xf32> to vector<16x128xf32>
    %cst_25 = arith.constant dense<0.000000e+00> : vector<8x16xf32>
    %47 = tpu.matmul %44, %45, %cst_25 {dimension_numbers = #tpu.dot_dimension_numbers<[1], [1], [0], [0], [0, 0, 1, 0], [], []>} : vector<8x128xf32>, vector<16x128xf32>, vector<8x16xf32> -> vector<8x16xf32>
    %cst_26 = arith.constant dense<0xFF800000> : vector<8xf32>
    %48 = vector.multi_reduction <maximumf>, %47, %cst_26 [1] : vector<8x16xf32> to vector<8xf32>
    %49 = vector.shape_cast %48 : vector<8xf32> to vector<8x1xf32>
    %50 = vector.broadcast %49 : vector<8x1xf32> to vector<8x16xf32>
    %51 = arith.subf %47, %50 : vector<8x16xf32>
    %52 = math.exp %51 : vector<8x16xf32>
    %cst_27 = arith.constant dense<0.000000e+00> : vector<8xf32>
    %53 = vector.multi_reduction <add>, %52, %cst_27 [1] : vector<8x16xf32> to vector<8xf32>
    %54 = vector.shape_cast %53 : vector<8xf32> to vector<8x1xf32>
    %cst_28 = arith.constant dense<0.000000e+00> : vector<8x128xf32>
    %55 = tpu.matmul %52, %46, %cst_28 {dimension_numbers = #tpu.dot_dimension_numbers<[1], [0], [0], [1], [0, 0, 1, 1], [], []>} : vector<8x16xf32>, vector<16x128xf32>, vector<8x128xf32> -> vector<8x128xf32>
    %56 = tpu.reciprocal %54 {approx = true} : vector<8x1xf32> -> vector<8x1xf32>
    %57 = vector.broadcast %56 : vector<8x1xf32> to vector<8x128xf32>
    %58 = arith.mulf %55, %57 : vector<8x128xf32>
    %c0_29 = arith.constant 0 : index
    %c256 = arith.constant 256 : index
    %59 = vector.load %arg9[%c0_29, %c256] : memref<16x512xf32, #tpu.memory_space<vmem>>, vector<8x128xf32>
    tpu.vector_store %arg9[%c0_29, %c256], %58 {strides = array<i32>} : memref<16x512xf32, #tpu.memory_space<vmem>>, vector<8x128xf32>,
    %60 = vector.extract_strided_slice %7 {offsets = [0, 384], sizes = [8, 128], strides = [1, 1]} : vector<16x512xf32> to vector<8x128xf32>
    %61 = vector.extract_strided_slice %9 {offsets = [0, 384], sizes = [16, 128], strides = [1, 1]} : vector<32x512xf32> to vector<16x128xf32>
    %62 = vector.extract_strided_slice %11 {offsets = [0, 384], sizes = [16, 128], strides = [1, 1]} : vector<32x512xf32> to vector<16x128xf32>
    %cst_30 = arith.constant dense<0.000000e+00> : vector<8x16xf32>
    %63 = tpu.matmul %60, %61, %cst_30 {dimension_numbers = #tpu.dot_dimension_numbers<[1], [1], [0], [0], [0, 0, 1, 0], [], []>} : vector<8x128xf32>, vector<16x128xf32>, vector<8x16xf32> -> vector<8x16xf32>
    %cst_31 = arith.constant dense<0xFF800000> : vector<8xf32>
    %64 = vector.multi_reduction <maximumf>, %63, %cst_31 [1] : vector<8x16xf32> to vector<8xf32>
    %65 = vector.shape_cast %64 : vector<8xf32> to vector<8x1xf32>
    %66 = vector.broadcast %65 : vector<8x1xf32> to vector<8x16xf32>
    %67 = arith.subf %63, %66 : vector<8x16xf32>
    %68 = math.exp %67 : vector<8x16xf32>
    %cst_32 = arith.constant dense<0.000000e+00> : vector<8xf32>
    %69 = vector.multi_reduction <add>, %68, %cst_32 [1] : vector<8x16xf32> to vector<8xf32>
    %70 = vector.shape_cast %69 : vector<8xf32> to vector<8x1xf32>
    %cst_33 = arith.constant dense<0.000000e+00> : vector<8x128xf32>
    %71 = tpu.matmul %68, %62, %cst_33 {dimension_numbers = #tpu.dot_dimension_numbers<[1], [0], [0], [1], [0, 0, 1, 1], [], []>} : vector<8x16xf32>, vector<16x128xf32>, vector<8x128xf32> -> vector<8x128xf32>
    %72 = tpu.reciprocal %70 {approx = true} : vector<8x1xf32> -> vector<8x1xf32>
    %73 = vector.broadcast %72 : vector<8x1xf32> to vector<8x128xf32>
    %74 = arith.mulf %71, %73 : vector<8x128xf32>
    %c0_34 = arith.constant 0 : index
    %c384 = arith.constant 384 : index
    %75 = vector.load %arg9[%c0_34, %c384] : memref<16x512xf32, #tpu.memory_space<vmem>>, vector<8x128xf32>
    tpu.vector_store %arg9[%c0_34, %c384], %74 {strides = array<i32>} : memref<16x512xf32, #tpu.memory_space<vmem>>, vector<8x128xf32>,
    %76 = vector.extract_strided_slice %7 {offsets = [8, 0], sizes = [8, 128], strides = [1, 1]} : vector<16x512xf32> to vector<8x128xf32>
    %77 = vector.extract_strided_slice %9 {offsets = [16, 0], sizes = [16, 128], strides = [1, 1]} : vector<32x512xf32> to vector<16x128xf32>
    %78 = vector.extract_strided_slice %11 {offsets = [16, 0], sizes = [16, 128], strides = [1, 1]} : vector<32x512xf32> to vector<16x128xf32>
    %cst_35 = arith.constant dense<0.000000e+00> : vector<8x16xf32>
    %79 = tpu.matmul %76, %77, %cst_35 {dimension_numbers = #tpu.dot_dimension_numbers<[1], [1], [0], [0], [0, 0, 1, 0], [], []>} : vector<8x128xf32>, vector<16x128xf32>, vector<8x16xf32> -> vector<8x16xf32>
    %cst_36 = arith.constant dense<0xFF800000> : vector<8xf32>
    %80 = vector.multi_reduction <maximumf>, %79, %cst_36 [1] : vector<8x16xf32> to vector<8xf32>
    %81 = vector.shape_cast %80 : vector<8xf32> to vector<8x1xf32>
    %82 = vector.broadcast %81 : vector<8x1xf32> to vector<8x16xf32>
    %83 = arith.subf %79, %82 : vector<8x16xf32>
    %84 = math.exp %83 : vector<8x16xf32>
    %cst_37 = arith.constant dense<0.000000e+00> : vector<8xf32>
    %85 = vector.multi_reduction <add>, %84, %cst_37 [1] : vector<8x16xf32> to vector<8xf32>
    %86 = vector.shape_cast %85 : vector<8xf32> to vector<8x1xf32>
    %cst_38 = arith.constant dense<0.000000e+00> : vector<8x128xf32>
    %87 = tpu.matmul %84, %78, %cst_38 {dimension_numbers = #tpu.dot_dimension_numbers<[1], [0], [0], [1], [0, 0, 1, 1], [], []>} : vector<8x16xf32>, vector<16x128xf32>, vector<8x128xf32> -> vector<8x128xf32>
    %88 = tpu.reciprocal %86 {approx = true} : vector<8x1xf32> -> vector<8x1xf32>
    %89 = vector.broadcast %88 : vector<8x1xf32> to vector<8x128xf32>
    %90 = arith.mulf %87, %89 : vector<8x128xf32>
    %c8 = arith.constant 8 : index
    %c0_39 = arith.constant 0 : index
    %91 = vector.load %arg9[%c8, %c0_39] : memref<16x512xf32, #tpu.memory_space<vmem>>, vector<8x128xf32>
    tpu.vector_store %arg9[%c8, %c0_39], %90 {strides = array<i32>} : memref<16x512xf32, #tpu.memory_space<vmem>>, vector<8x128xf32>,
    %92 = vector.extract_strided_slice %7 {offsets = [8, 128], sizes = [8, 128], strides = [1, 1]} : vector<16x512xf32> to vector<8x128xf32>
    %93 = vector.extract_strided_slice %9 {offsets = [16, 128], sizes = [16, 128], strides = [1, 1]} : vector<32x512xf32> to vector<16x128xf32>
    %94 = vector.extract_strided_slice %11 {offsets = [16, 128], sizes = [16, 128], strides = [1, 1]} : vector<32x512xf32> to vector<16x128xf32>
    %cst_40 = arith.constant dense<0.000000e+00> : vector<8x16xf32>
    %95 = tpu.matmul %92, %93, %cst_40 {dimension_numbers = #tpu.dot_dimension_numbers<[1], [1], [0], [0], [0, 0, 1, 0], [], []>} : vector<8x128xf32>, vector<16x128xf32>, vector<8x16xf32> -> vector<8x16xf32>
    %cst_41 = arith.constant dense<0xFF800000> : vector<8xf32>
    %96 = vector.multi_reduction <maximumf>, %95, %cst_41 [1] : vector<8x16xf32> to vector<8xf32>
    %97 = vector.shape_cast %96 : vector<8xf32> to vector<8x1xf32>
    %98 = vector.broadcast %97 : vector<8x1xf32> to vector<8x16xf32>
    %99 = arith.subf %95, %98 : vector<8x16xf32>
    %100 = math.exp %99 : vector<8x16xf32>
    %cst_42 = arith.constant dense<0.000000e+00> : vector<8xf32>
    %101 = vector.multi_reduction <add>, %100, %cst_42 [1] : vector<8x16xf32> to vector<8xf32>
    %102 = vector.shape_cast %101 : vector<8xf32> to vector<8x1xf32>
    %cst_43 = arith.constant dense<0.000000e+00> : vector<8x128xf32>
    %103 = tpu.matmul %100, %94, %cst_43 {dimension_numbers = #tpu.dot_dimension_numbers<[1], [0], [0], [1], [0, 0, 1, 1], [], []>} : vector<8x16xf32>, vector<16x128xf32>, vector<8x128xf32> -> vector<8x128xf32>
    %104 = tpu.reciprocal %102 {approx = true} : vector<8x1xf32> -> vector<8x1xf32>
    %105 = vector.broadcast %104 : vector<8x1xf32> to vector<8x128xf32>
    %106 = arith.mulf %103, %105 : vector<8x128xf32>
    %c8_44 = arith.constant 8 : index
    %c128_45 = arith.constant 128 : index
    %107 = vector.load %arg9[%c8_44, %c128_45] : memref<16x512xf32, #tpu.memory_space<vmem>>, vector<8x128xf32>
    tpu.vector_store %arg9[%c8_44, %c128_45], %106 {strides = array<i32>} : memref<16x512xf32, #tpu.memory_space<vmem>>, vector<8x128xf32>,
    %108 = vector.extract_strided_slice %7 {offsets = [8, 256], sizes = [8, 128], strides = [1, 1]} : vector<16x512xf32> to vector<8x128xf32>
    %109 = vector.extract_strided_slice %9 {offsets = [16, 256], sizes = [16, 128], strides = [1, 1]} : vector<32x512xf32> to vector<16x128xf32>
    %110 = vector.extract_strided_slice %11 {offsets = [16, 256], sizes = [16, 128], strides = [1, 1]} : vector<32x512xf32> to vector<16x128xf32>
    %cst_46 = arith.constant dense<0.000000e+00> : vector<8x16xf32>
    %111 = tpu.matmul %108, %109, %cst_46 {dimension_numbers = #tpu.dot_dimension_numbers<[1], [1], [0], [0], [0, 0, 1, 0], [], []>} : vector<8x128xf32>, vector<16x128xf32>, vector<8x16xf32> -> vector<8x16xf32>
    %cst_47 = arith.constant dense<0xFF800000> : vector<8xf32>
    %112 = vector.multi_reduction <maximumf>, %111, %cst_47 [1] : vector<8x16xf32> to vector<8xf32>
    %113 = vector.shape_cast %112 : vector<8xf32> to vector<8x1xf32>
    %114 = vector.broadcast %113 : vector<8x1xf32> to vector<8x16xf32>
    %115 = arith.subf %111, %114 : vector<8x16xf32>
    %116 = math.exp %115 : vector<8x16xf32>
    %cst_48 = arith.constant dense<0.000000e+00> : vector<8xf32>
    %117 = vector.multi_reduction <add>, %116, %cst_48 [1] : vector<8x16xf32> to vector<8xf32>
    %118 = vector.shape_cast %117 : vector<8xf32> to vector<8x1xf32>
    %cst_49 = arith.constant dense<0.000000e+00> : vector<8x128xf32>
    %119 = tpu.matmul %116, %110, %cst_49 {dimension_numbers = #tpu.dot_dimension_numbers<[1], [0], [0], [1], [0, 0, 1, 1], [], []>} : vector<8x16xf32>, vector<16x128xf32>, vector<8x128xf32> -> vector<8x128xf32>
    %120 = tpu.reciprocal %118 {approx = true} : vector<8x1xf32> -> vector<8x1xf32>
    %121 = vector.broadcast %120 : vector<8x1xf32> to vector<8x128xf32>
    %122 = arith.mulf %119, %121 : vector<8x128xf32>
    %c8_50 = arith.constant 8 : index
    %c256_51 = arith.constant 256 : index
    %123 = vector.load %arg9[%c8_50, %c256_51] : memref<16x512xf32, #tpu.memory_space<vmem>>, vector<8x128xf32>
    tpu.vector_store %arg9[%c8_50, %c256_51], %122 {strides = array<i32>} : memref<16x512xf32, #tpu.memory_space<vmem>>, vector<8x128xf32>,
    %124 = vector.extract_strided_slice %7 {offsets = [8, 384], sizes = [8, 128], strides = [1, 1]} : vector<16x512xf32> to vector<8x128xf32>
    %125 = vector.extract_strided_slice %9 {offsets = [16, 384], sizes = [16, 128], strides = [1, 1]} : vector<32x512xf32> to vector<16x128xf32>
    %126 = vector.extract_strided_slice %11 {offsets = [16, 384], sizes = [16, 128], strides = [1, 1]} : vector<32x512xf32> to vector<16x128xf32>
    %cst_52 = arith.constant dense<0.000000e+00> : vector<8x16xf32>
    %127 = tpu.matmul %124, %125, %cst_52 {dimension_numbers = #tpu.dot_dimension_numbers<[1], [1], [0], [0], [0, 0, 1, 0], [], []>} : vector<8x128xf32>, vector<16x128xf32>, vector<8x16xf32> -> vector<8x16xf32>
    %cst_53 = arith.constant dense<0xFF800000> : vector<8xf32>
    %128 = vector.multi_reduction <maximumf>, %127, %cst_53 [1] : vector<8x16xf32> to vector<8xf32>
    %129 = vector.shape_cast %128 : vector<8xf32> to vector<8x1xf32>
    %130 = vector.broadcast %129 : vector<8x1xf32> to vector<8x16xf32>
    %131 = arith.subf %127, %130 : vector<8x16xf32>
    %132 = math.exp %131 : vector<8x16xf32>
    %cst_54 = arith.constant dense<0.000000e+00> : vector<8xf32>
    %133 = vector.multi_reduction <add>, %132, %cst_54 [1] : vector<8x16xf32> to vector<8xf32>
    %134 = vector.shape_cast %133 : vector<8xf32> to vector<8x1xf32>
    %cst_55 = arith.constant dense<0.000000e+00> : vector<8x128xf32>
    %135 = tpu.matmul %132, %126, %cst_55 {dimension_numbers = #tpu.dot_dimension_numbers<[1], [0], [0], [1], [0, 0, 1, 1], [], []>} : vector<8x16xf32>, vector<16x128xf32>, vector<8x128xf32> -> vector<8x128xf32>
    %136 = tpu.reciprocal %134 {approx = true} : vector<8x1xf32> -> vector<8x1xf32>
    %137 = vector.broadcast %136 : vector<8x1xf32> to vector<8x128xf32>
    %138 = arith.mulf %135, %137 : vector<8x128xf32>
    %c8_56 = arith.constant 8 : index
    %c384_57 = arith.constant 384 : index
    %139 = vector.load %arg9[%c8_56, %c384_57] : memref<16x512xf32, #tpu.memory_space<vmem>>, vector<8x128xf32>
    tpu.vector_store %arg9[%c8_56, %c384_57], %138 {strides = array<i32>} : memref<16x512xf32, #tpu.memory_space<vmem>>, vector<8x128xf32>,
    %c0_58 = arith.constant 0 : index
    %c0_59 = arith.constant 0 : index
    %140 = vector.load %arg9[%c0_58, %c0_59] : memref<16x512xf32, #tpu.memory_space<vmem>>, vector<16x512xf32>
    %c0_60 = arith.constant 0 : index
    %c0_61 = arith.constant 0 : index
    %141 = vector.load %arg6[%c0_60, %c0_61] : memref<512x128xf32, #tpu.memory_space<vmem>>, vector<512x128xf32>
    %cst_62 = arith.constant dense<0.000000e+00> : vector<16x128xf32>
    %142 = tpu.matmul %140, %141, %cst_62 {dimension_numbers = #tpu.dot_dimension_numbers<[1], [0], [0], [1], [0, 0, 1, 1], [], []>} : vector<16x512xf32>, vector<512x128xf32>, vector<16x128xf32> -> vector<16x128xf32>
    %c0_63 = arith.constant 0 : index
    %c0_64 = arith.constant 0 : index
    %143 = vector.load %arg7[%c0_63, %c0_64] : memref<1x128xf32, #tpu.memory_space<vmem>>, vector<1x128xf32>
    %144 = vector.broadcast %143 : vector<1x128xf32> to vector<16x128xf32>
    %145 = arith.addf %142, %144 : vector<16x128xf32>
    %146 = vector.shape_cast %145 : vector<16x128xf32> to vector<2x8x128xf32>
    %c0_65 = arith.constant 0 : index
    %c0_66 = arith.constant 0 : index
    %c0_67 = arith.constant 0 : index
    %147 = vector.load %arg8[%c0_65, %c0_66, %c0_67] : memref<2x8x128xf32, #tpu.memory_space<vmem>>, vector<2x8x128xf32>
    tpu.vector_store %arg8[%c0_65, %c0_66, %c0_67], %146 {strides = array<i32>} : memref<2x8x128xf32, #tpu.memory_space<vmem>>, vector<2x8x128xf32>,
    return
  }
  func.func @transform_0(%arg0: i32) -> (i32, i32, i32) {
    %c0_i32 = arith.constant 0 : i32
    %c0_i32_0 = arith.constant 0 : i32
    %c0_i32_1 = arith.constant 0 : i32
    return %arg0, %c0_i32, %c0_i32_0 : i32, i32, i32
  }
  func.func @transform_1(%arg0: i32) -> (i32, i32, i32) {
    %c0_i32 = arith.constant 0 : i32
    %c0_i32_0 = arith.constant 0 : i32
    %c0_i32_1 = arith.constant 0 : i32
    return %arg0, %c0_i32, %c0_i32_0 : i32, i32, i32
  }
  func.func @transform_2(%arg0: i32) -> (i32, i32) {
    %c0_i32 = arith.constant 0 : i32
    %c0_i32_0 = arith.constant 0 : i32
    %c0_i32_1 = arith.constant 0 : i32
    return %c0_i32, %c0_i32_0 : i32, i32
  }
  func.func @transform_3(%arg0: i32) -> (i32, i32) {
    %c0_i32 = arith.constant 0 : i32
    %c0_i32_0 = arith.constant 0 : i32
    %c0_i32_1 = arith.constant 0 : i32
    return %c0_i32, %c0_i32_0 : i32, i32
  }
  func.func @transform_4(%arg0: i32) -> (i32, i32) {
    %c0_i32 = arith.constant 0 : i32
    %c0_i32_0 = arith.constant 0 : i32
    %c0_i32_1 = arith.constant 0 : i32
    return %c0_i32, %c0_i32_0 : i32, i32
  }
  func.func @transform_5(%arg0: i32) -> (i32, i32) {
    %c0_i32 = arith.constant 0 : i32
    %c0_i32_0 = arith.constant 0 : i32
    %c0_i32_1 = arith.constant 0 : i32
    return %c0_i32, %c0_i32_0 : i32, i32
  }
  func.func @transform_6(%arg0: i32) -> (i32, i32) {
    %c0_i32 = arith.constant 0 : i32
    %c0_i32_0 = arith.constant 0 : i32
    %c0_i32_1 = arith.constant 0 : i32
    return %c0_i32, %c0_i32_0 : i32, i32
  }
  func.func @transform_7(%arg0: i32) -> (i32, i32, i32) {
    %c0_i32 = arith.constant 0 : i32
    %c0_i32_0 = arith.constant 0 : i32
    %c0_i32_1 = arith.constant 0 : i32
    return %arg0, %c0_i32, %c0_i32_0 : i32, i32, i32
  }
}

</mosaic_0001>

<llo_original>
// kernel: tpu_custom_call.1
$region0: #{tpu_custom_call.1}
  #allocation0 [shape = 'u32[]', space=smem, size = 0x4, offset = 0x4, fixed_abs, tag = 'smem constant byte address 0x4 - core index']
  #allocation1 [shape = 'u32[144,128]{1,0:T(1,128)}', space=vmem, size = 0x12000, scoped, tag = 'internal scratch']
  #allocation2 [shape = 'f32[16,512]{1,0:T(8,128)}', space=vmem, size = 0x8000, scoped, tag = 'scratch operand']
  %s0 = inlined_call_operand.hbm [shape: f32[2,8,32], index: 0, kind: input, shape index: {}]
  %s1 = inlined_call_operand.hbm [shape: f32[2,16,32], index: 1, kind: input, shape index: {}]
  %s2 = inlined_call_operand.hbm [shape: f32[32,512], index: 2, kind: input, shape index: {}]
  %s3 = inlined_call_operand.hbm [shape: f32[32,512], index: 3, kind: input, shape index: {}]
  %s4 = inlined_call_operand.hbm [shape: f32[32,512], index: 4, kind: input, shape index: {}]
  %s5 = inlined_call_operand.hbm [shape: f32[512,128], index: 5, kind: input, shape index: {}]
  %s6 = inlined_call_operand.hbm [shape: f32[1,128], index: 6, kind: input, shape index: {}]
  %s7 = inlined_call_operand.hbm [shape: f32[2,8,128], index: 7, kind: output, shape index: {}]
  %s8 = sld [smem:[#allocation0]]
  $region66: #{tpu_custom_call.1} parent=0
    _
  %s10 = ssub.s32 1, %s8
  %s11 = scalar_select 0, %s10, %s8
  $region1: #{tpu_custom_call.1} parent=0
    #allocation3 [shape = 'u8[8192]{0}', space=vmem, size = 0x2000, scoped, tag = 'input window, operand 0, single buffered']
    #allocation4 [shape = 's32[1]{0}', space=sflag, size = 0x4, scoped, tag = 'scoped memory for tpu_custom_call.1']
    #allocation5 [shape = 's32[1]{0}', space=sflag, size = 0x4, scoped, tag = 'scoped memory for tpu_custom_call.1']
    #allocation6 [shape = 'u8[16384]{0}', space=vmem, size = 0x4000, scoped, tag = 'input window, operand 1, single buffered']
    #allocation7 [shape = 's32[1]{0}', space=sflag, size = 0x4, scoped, tag = 'scoped memory for tpu_custom_call.1']
    #allocation8 [shape = 'u8[65536]{0}', space=vmem, size = 0x10000, scoped, tag = 'input window, operand 2, single buffered']
    #allocation9 [shape = 'u8[65536]{0}', space=vmem, size = 0x10000, scoped, tag = 'input window, operand 3, single buffered']
    #allocation10 [shape = 's32[1]{0}', space=sflag, size = 0x4, scoped, tag = 'scoped memory for tpu_custom_call.1']
    #allocation11 [shape = 'u8[65536]{0}', space=vmem, size = 0x10000, scoped, tag = 'input window, operand 4, single buffered']
    #allocation12 [shape = 'u8[262144]{0}', space=vmem, size = 0x40000, scoped, tag = 'input window, operand 5, single buffered']
    #allocation13 [shape = 's32[1]{0}', space=sflag, size = 0x4, scoped, tag = 'scoped memory for tpu_custom_call.1']
    #allocation14 [shape = 'u8[512]{0}', space=vmem, size = 0x400, scoped, tag = 'input window, operand 6, single buffered']
    #allocation15 [shape = 'u8[8192]{0}', space=vmem, size = 0x2000, scoped, tag = 'output window, operand 0, single buffered']
    %12 = vsyncpa [#allocation4], 0
    %13 = vsyncpa [#allocation7], 0
    %14 = vsyncpa [#allocation10], 0
    %15 = vsyncpa [#allocation13], 0
    %16 = vsyncpa [#allocation5], 0
    // Predicated region
    $region2: #{tpu_custom_call.1} parent=1 // pred_check
      _
    $region3: #{tpu_custom_call.1} parent=1 // pred_check_branch
      %18 = sbr.rel (0) target = $region5
    $region4: #{tpu_custom_call.1} parent=1 // pred_region
      %s20 = ssub.s32 256, 256
      %21 = vsyncadd [#allocation4], %s20
      %s22 = sshll.u32 [#allocation3], 4
      %s23 = int_to_ptr.vmem [resolvable:$true] %s22
      %28 = dma.hbm_to_vmem [thread:$0]  %s0, 256, %s23, [#allocation4], 128, 128, 8
    $region5: #{tpu_custom_call.1} parent=1 // pred_fallthru
      _
    // Predicated region
    $region6: #{tpu_custom_call.1} parent=1 // pred_check
      _
    $region7: #{tpu_custom_call.1} parent=1 // pred_check_branch
      %30 = sbr.rel (0) target = $region9
    $region8: #{tpu_custom_call.1} parent=1 // pred_region
      %s32 = ssub.s32 512, 512
      %33 = vsyncadd [#allocation7], %s32
      %s34 = sshll.u32 [#allocation6], 4
      %s35 = int_to_ptr.vmem [resolvable:$true] %s34
      %40 = dma.hbm_to_vmem [thread:$0]  %s1, 512, %s35, [#allocation7], 128, 128, 8
    $region9: #{tpu_custom_call.1} parent=1 // pred_fallthru
      _
    // Predicated region
    $region10: #{tpu_custom_call.1} parent=1 // pred_check
      _
    $region11: #{tpu_custom_call.1} parent=1 // pred_check_branch
      %42 = sbr.rel (0) target = $region13
    $region12: #{tpu_custom_call.1} parent=1 // pred_region
      %s44 = ssub.s32 2048, 2048
      %45 = vsyncadd [#allocation7], %s44
      %s46 = sshll.u32 [#allocation8], 4
      %s47 = int_to_ptr.vmem [resolvable:$true] %s46
      %52 = dma.hbm_to_vmem [thread:$0]  %s2, 2048, %s47, [#allocation7], 512, 512, 32
    $region13: #{tpu_custom_call.1} parent=1 // pred_fallthru
      _
    // Predicated region
    $region14: #{tpu_custom_call.1} parent=1 // pred_check
      _
    $region15: #{tpu_custom_call.1} parent=1 // pred_check_branch
      %54 = sbr.rel (0) target = $region17
    $region16: #{tpu_custom_call.1} parent=1 // pred_region
      %s56 = ssub.s32 2048, 2048
      %57 = vsyncadd [#allocation10], %s56
      %s58 = sshll.u32 [#allocation9], 4
      %s59 = int_to_ptr.vmem [resolvable:$true] %s58
      %64 = dma.hbm_to_vmem [thread:$0]  %s3, 2048, %s59, [#allocation10], 512, 512, 32
    $region17: #{tpu_custom_call.1} parent=1 // pred_fallthru
      _
    // Predicated region
    $region18: #{tpu_custom_call.1} parent=1 // pred_check
      _
    $region19: #{tpu_custom_call.1} parent=1 // pred_check_branch
      %66 = sbr.rel (0) target = $region21
    $region20: #{tpu_custom_call.1} parent=1 // pred_region
      %s68 = ssub.s32 2048, 2048
      %69 = vsyncadd [#allocation10], %s68
      %s70 = sshll.u32 [#allocation11], 4
      %s71 = int_to_ptr.vmem [resolvable:$true] %s70
      %76 = dma.hbm_to_vmem [thread:$0]  %s4, 2048, %s71, [#allocation10], 512, 512, 32
    $region21: #{tpu_custom_call.1} parent=1 // pred_fallthru
      _
    // Predicated region
    $region22: #{tpu_custom_call.1} parent=1 // pred_check
      _
    $region23: #{tpu_custom_call.1} parent=1 // pred_check_branch
      %78 = sbr.rel (0) target = $region25
    $region24: #{tpu_custom_call.1} parent=1 // pred_region
      %s80 = ssub.s32 8192, 8192
      %81 = vsyncadd [#allocation13], %s80
      %s82 = sshll.u32 [#allocation12], 4
      %s83 = int_to_ptr.vmem [resolvable:$true] %s82
      %88 = dma.hbm_to_vmem [thread:$0]  %s5, 8192, %s83, [#allocation13], 128, 128, 8
    $region25: #{tpu_custom_call.1} parent=1 // pred_fallthru
      _
    // Predicated region
    $region26: #{tpu_custom_call.1} parent=1 // pred_check
      _
    $region27: #{tpu_custom_call.1} parent=1 // pred_check_branch
      %90 = sbr.rel (0) target = $region29
    $region28: #{tpu_custom_call.1} parent=1 // pred_region
      %s92 = ssub.s32 16, 16
      %93 = vsyncadd [#allocation13], %s92
      %s95 = sshll.u32 [#allocation14], 4
      %s96 = int_to_ptr.vmem [resolvable:$true] %s95
      %98 = dma.hbm_to_vmem [thread:$0]  %s6, 16, %s96, [#allocation13]
    $region29: #{tpu_custom_call.1} parent=1 // pred_fallthru
      _
    // Predicated region
    $region30: #{tpu_custom_call.1} parent=1 // pred_check
      _
    $region31: #{tpu_custom_call.1} parent=1 // pred_check_branch
      %100 = sbr.rel (0) target = $region33
    $region32: #{tpu_custom_call.1} parent=1 // pred_region
      %101 = dma.done [#allocation4], 256
    $region33: #{tpu_custom_call.1} parent=1 // pred_fallthru
      _
    // Predicated region
    $region34: #{tpu_custom_call.1} parent=1 // pred_check
      _
    $region35: #{tpu_custom_call.1} parent=1 // pred_check_branch
      %103 = sbr.rel (0) target = $region37
    $region36: #{tpu_custom_call.1} parent=1 // pred_region
      %104 = dma.done [#allocation7], 512
    $region37: #{tpu_custom_call.1} parent=1 // pred_fallthru
      _
    // Predicated region
    $region38: #{tpu_custom_call.1} parent=1 // pred_check
      _
    $region39: #{tpu_custom_call.1} parent=1 // pred_check_branch
      %106 = sbr.rel (0) target = $region41
    $region40: #{tpu_custom_call.1} parent=1 // pred_region
      %107 = dma.done [#allocation7], 2048
    $region41: #{tpu_custom_call.1} parent=1 // pred_fallthru
      _
    // Predicated region
    $region42: #{tpu_custom_call.1} parent=1 // pred_check
      _
    $region43: #{tpu_custom_call.1} parent=1 // pred_check_branch
      %109 = sbr.rel (0) target = $region45
    $region44: #{tpu_custom_call.1} parent=1 // pred_region
      %110 = dma.done [#allocation10], 2048
    $region45: #{tpu_custom_call.1} parent=1 // pred_fallthru
      _
    // Predicated region
    $region46: #{tpu_custom_call.1} parent=1 // pred_check
      _
    $region47: #{tpu_custom_call.1} parent=1 // pred_check_branch
      %112 = sbr.rel (0) target = $region49
    $region48: #{tpu_custom_call.1} parent=1 // pred_region
      %113 = dma.done [#allocation10], 2048
    $region49: #{tpu_custom_call.1} parent=1 // pred_fallthru
      _
    // Predicated region
    $region50: #{tpu_custom_call.1} parent=1 // pred_check
      _
    $region51: #{tpu_custom_call.1} parent=1 // pred_check_branch
      %115 = sbr.rel (0) target = $region53
    $region52: #{tpu_custom_call.1} parent=1 // pred_region
      %116 = dma.done [#allocation13], 8192
    $region53: #{tpu_custom_call.1} parent=1 // pred_fallthru
      _
    // Predicated region
    $region54: #{tpu_custom_call.1} parent=1 // pred_check
      _
    $region55: #{tpu_custom_call.1} parent=1 // pred_check_branch
      %118 = sbr.rel (0) target = $region57
    $region56: #{tpu_custom_call.1} parent=1 // pred_region
      %119 = dma.done [#allocation13], 16
    $region57: #{tpu_custom_call.1} parent=1 // pred_fallthru
      _
    %v120 = vld [vmem:[#allocation3] sm:$0xff]
    %v121 = vld [vmem:[#allocation3 + $0x8] sm:$0xff]
    %v122 = vld [vmem:[#allocation6] sm:$0xff]
    %v123 = vld [vmem:[#allocation6 + $0x8] sm:$0xff]
    %v124 = vld [vmem:[#allocation6 + $0x10] sm:$0xff]
    %v125 = vld [vmem:[#allocation6 + $0x18] sm:$0xff]
    %v126 = vld [vmem:[#allocation8] sm:$0xff]
    %v127 = vld [vmem:[#allocation8 + $0x8] sm:$0xff]
    %v128 = vld [vmem:[#allocation8 + $0x10] sm:$0xff]
    %v129 = vld [vmem:[#allocation8 + $0x18] sm:$0xff]
    %v130 = vld [vmem:[#allocation8 + $0x20] sm:$0xff]
    %v131 = vld [vmem:[#allocation8 + $0x28] sm:$0xff]
    %v132 = vld [vmem:[#allocation8 + $0x30] sm:$0xff]
    %v133 = vld [vmem:[#allocation8 + $0x38] sm:$0xff]
    %v134 = vld [vmem:[#allocation8 + $0x40] sm:$0xff]
    %v135 = vld [vmem:[#allocation8 + $0x48] sm:$0xff]
    %v136 = vld [vmem:[#allocation8 + $0x50] sm:$0xff]
    %v137 = vld [vmem:[#allocation8 + $0x58] sm:$0xff]
    %v138 = vld [vmem:[#allocation8 + $0x60] sm:$0xff]
    %v139 = vld [vmem:[#allocation8 + $0x68] sm:$0xff]
    %v140 = vld [vmem:[#allocation8 + $0x70] sm:$0xff]
    %v141 = vld [vmem:[#allocation8 + $0x78] sm:$0xff]
    %vm142 = vcmask 261120
    %v144 = vsel %vm142, %v120, 0
    %v147 = vsel %vm142, %v121, 0
    %149 = vmatprep.subr.mxu0 %v127
    %150 = vmatpush1.msra.mxu0 %v126
    %151 = vmatprep.subr.mxu0 %v131
    %152 = vmatpush1.msra.mxu0 %v130
    %153 = vmatprep.subr.mxu0 %v135
    %154 = vmatpush1.msra.mxu0 %v134
    %155 = vmatprep.subr.mxu0 %v139
    %156 = vmatpush1.msra.mxu0 %v138
    %157 = vmatprep.subr.mxu0 0.0
    %158 = vmatpush1.msra.mxu0 0.0
    %159 = vmatprep.subr.mxu0 0.0
    %160 = vmatpush1.msra.mxu0 0.0
    %161 = vmatprep.subr.mxu0 0.0
    %162 = vmatpush1.msra.mxu0 0.0
    %163 = vmatprep.subr.mxu0 0.0
    %164 = vmatpush1.msra.mxu0 0.0
    %165 = vmatprep.subr.mxu0 0.0
    %166 = vmatpush1.msra.mxu0 0.0
    %167 = vmatprep.subr.mxu0 0.0
    %168 = vmatpush1.msra.mxu0 0.0
    %169 = vmatprep.subr.mxu0 0.0
    %170 = vmatpush1.msra.mxu0 0.0
    %171 = vmatprep.subr.mxu0 0.0
    %172 = vmatpush1.msra.mxu0 0.0
    %173 = vmatprep.subr.mxu0 0.0
    %174 = vmatpush1.msra.mxu0 0.0
    %175 = vmatprep.subr.mxu0 0.0
    %176 = vmatpush1.msra.mxu0 0.0
    %177 = vmatprep.subr.mxu0 0.0
    %178 = vmatpush1.msra.mxu0 0.0
    %179 = vmatprep.subr.mxu0 0.0
    %180 = vmatpush1.msra.mxu0 0.0
    %181 = vmatprep.subr.mxu0 0.0
    %182 = vmatpush1.msra.mxu0 0.0
    %183 = vmatprep.subr.mxu0 0.0
    %184 = vmatpush1.msra.mxu0 0.0
    %185 = vmatprep.subr.mxu0 0.0
    %186 = vmatpush1.msra.mxu0 0.0
    %187 = vmatprep.subr.mxu0 0.0
    %188 = vmatpush1.msra.mxu0 0.0
    %189 = vmatprep.subr.mxu0 0.0
    %190 = vmatpush1.msra.mxu0 0.0
    %191 = vmatprep.subr.mxu0 0.0
    %192 = vmatpush1.msra.mxu0 0.0
    %193 = vmatprep.subr.mxu0 0.0
    %194 = vmatpush1.msra.mxu0 0.0
    %195 = vmatprep.subr.mxu0 0.0
    %196 = vmatpush1.msra.mxu0 0.0
    %197 = vmatprep.subr.mxu0 0.0
    %198 = vmatpush1.msra.mxu0 0.0
    %199 = vmatprep.subr.mxu0 0.0
    %200 = vmatpush1.msra.mxu0 0.0
    %201 = vmatprep.subr.mxu0 0.0
    %202 = vmatpush1.msra.mxu0 0.0
    %203 = vmatprep.subr.mxu0 0.0
    %204 = vmatpush1.msra.mxu0 0.0
    %205 = vmatprep.subr.mxu0 0.0
    %206 = vmatpush1.msra.mxu0 0.0
    %207 = vmatprep.subr.mxu0 0.0
    %208 = vmatpush1.msra.mxu0 0.0
    %209 = vmatprep.subr.mxu0 0.0
    %210 = vmatpush1.msra.mxu0 0.0
    %211 = vmatprep.subr.mxu0 0.0
    %212 = vmatpush1.msra.mxu0 0.0
    %213 = vmatprep.mubr.f32.mxu0 0.0
    %214 = vmatmul.mubr.f32.gmra.mrb[0].mxu0 %v144
    %v215 = vpop.f32.mrb[0].mxu0
    %v216 = vadd.f32 0.0, %v215
    %v217 = vpop.f32.mrb[0].mxu0
    %v218 = vadd.f32 0.0, %v217
    %219 = vmatprep.mubr.f32.mxu0 0.0
    %220 = vmatmul.mubr.f32.gmra.mrb[0].mxu0 %v147
    %v221 = vpop.f32.mrb[0].mxu0
    %v222 = vadd.f32 0.0, %v221
    %v223 = vpop.f32.mrb[0].mxu0
    %v224 = vadd.f32 0.0, %v223
    %225 = vdwg.mxu0
    %226 = vmatprep.subr.mxu0 %v129
    %227 = vmatpush1.msra.mxu0 %v128
    %228 = vmatprep.subr.mxu0 %v133
    %229 = vmatpush1.msra.mxu0 %v132
    %230 = vmatprep.subr.mxu0 %v137
    %231 = vmatpush1.msra.mxu0 %v136
    %232 = vmatprep.subr.mxu0 %v141
    %233 = vmatpush1.msra.mxu0 %v140
    %234 = vmatprep.subr.mxu0 0.0
    %235 = vmatpush1.msra.mxu0 0.0
    %236 = vmatprep.subr.mxu0 0.0
    %237 = vmatpush1.msra.mxu0 0.0
    %238 = vmatprep.subr.mxu0 0.0
    %239 = vmatpush1.msra.mxu0 0.0
    %240 = vmatprep.subr.mxu0 0.0
    %241 = vmatpush1.msra.mxu0 0.0
    %242 = vmatprep.subr.mxu0 0.0
    %243 = vmatpush1.msra.mxu0 0.0
    %244 = vmatprep.subr.mxu0 0.0
    %245 = vmatpush1.msra.mxu0 0.0
    %246 = vmatprep.subr.mxu0 0.0
    %247 = vmatpush1.msra.mxu0 0.0
    %248 = vmatprep.subr.mxu0 0.0
    %249 = vmatpush1.msra.mxu0 0.0
    %250 = vmatprep.subr.mxu0 0.0
    %251 = vmatpush1.msra.mxu0 0.0
    %252 = vmatprep.subr.mxu0 0.0
    %253 = vmatpush1.msra.mxu0 0.0
    %254 = vmatprep.subr.mxu0 0.0
    %255 = vmatpush1.msra.mxu0 0.0
    %256 = vmatprep.subr.mxu0 0.0
    %257 = vmatpush1.msra.mxu0 0.0
    %258 = vmatprep.subr.mxu0 0.0
    %259 = vmatpush1.msra.mxu0 0.0
    %260 = vmatprep.subr.mxu0 0.0
    %261 = vmatpush1.msra.mxu0 0.0
    %262 = vmatprep.subr.mxu0 0.0
    %263 = vmatpush1.msra.mxu0 0.0
    %264 = vmatprep.subr.mxu0 0.0
    %265 = vmatpush1.msra.mxu0 0.0
    %266 = vmatprep.subr.mxu0 0.0
    %267 = vmatpush1.msra.mxu0 0.0
    %268 = vmatprep.subr.mxu0 0.0
    %269 = vmatpush1.msra.mxu0 0.0
    %270 = vmatprep.subr.mxu0 0.0
    %271 = vmatpush1.msra.mxu0 0.0
    %272 = vmatprep.subr.mxu0 0.0
    %273 = vmatpush1.msra.mxu0 0.0
    %274 = vmatprep.subr.mxu0 0.0
    %275 = vmatpush1.msra.mxu0 0.0
    %276 = vmatprep.subr.mxu0 0.0
    %277 = vmatpush1.msra.mxu0 0.0
    %278 = vmatprep.subr.mxu0 0.0
    %279 = vmatpush1.msra.mxu0 0.0
    %280 = vmatprep.subr.mxu0 0.0
    %281 = vmatpush1.msra.mxu0 0.0
    %282 = vmatprep.subr.mxu0 0.0
    %283 = vmatpush1.msra.mxu0 0.0
    %284 = vmatprep.subr.mxu0 0.0
    %285 = vmatpush1.msra.mxu0 0.0
    %286 = vmatprep.subr.mxu0 0.0
    %287 = vmatpush1.msra.mxu0 0.0
    %288 = vmatprep.subr.mxu0 0.0
    %289 = vmatpush1.msra.mxu0 0.0
    %290 = vmatprep.mubr.f32.mxu0 0.0
    %291 = vmatmul.mubr.f32.gmra.mrb[0].mxu0 %v144
    %v292 = vpop.f32.mrb[0].mxu0
    %v293 = vadd.f32 0.0, %v292
    %v294 = vpop.f32.mrb[0].mxu0
    %v295 = vadd.f32 0.0, %v294
    %296 = vmatprep.mubr.f32.mxu0 0.0
    %297 = vmatmul.mubr.f32.gmra.mrb[0].mxu0 %v147
    %v298 = vpop.f32.mrb[0].mxu0
    %v299 = vadd.f32 0.0, %v298
    %v300 = vpop.f32.mrb[0].mxu0
    %v301 = vadd.f32 0.0, %v300
    %302 = vdwg.mxu0
    %v303 = vmul.f32 %v216, 0.088388346
    %v304 = vmul.f32 %v218, 0.088388346
    %v305 = vmul.f32 %v293, 0.088388346
    %v306 = vmul.f32 %v295, 0.088388346
    %v307 = vmul.f32 %v222, 0.088388346
    %v308 = vmul.f32 %v224, 0.088388346
    %v309 = vmul.f32 %v299, 0.088388346
    %v310 = vmul.f32 %v301, 0.088388346
    %v311 = vld [vmem:[#allocation9] sm:$0xff]
    %v312 = vld [vmem:[#allocation9 + $0x8] sm:$0xff]
    %v313 = vld [vmem:[#allocation9 + $0x10] sm:$0xff]
    %v314 = vld [vmem:[#allocation9 + $0x18] sm:$0xff]
    %v315 = vld [vmem:[#allocation9 + $0x20] sm:$0xff]
    %v316 = vld [vmem:[#allocation9 + $0x28] sm:$0xff]
    %v317 = vld [vmem:[#allocation9 + $0x30] sm:$0xff]
    %v318 = vld [vmem:[#allocation9 + $0x38] sm:$0xff]
    %v319 = vld [vmem:[#allocation9 + $0x40] sm:$0xff]
    %v320 = vld [vmem:[#allocation9 + $0x48] sm:$0xff]
    %v321 = vld [vmem:[#allocation9 + $0x50] sm:$0xff]
    %v322 = vld [vmem:[#allocation9 + $0x58] sm:$0xff]
    %v323 = vld [vmem:[#allocation9 + $0x60] sm:$0xff]
    %v324 = vld [vmem:[#allocation9 + $0x68] sm:$0xff]
    %v325 = vld [vmem:[#allocation9 + $0x70] sm:$0xff]
    %v326 = vld [vmem:[#allocation9 + $0x78] sm:$0xff]
    %v328 = vsel %vm142, %v122, 0
    %v331 = vsel %vm142, %v123, 0
    %v334 = vsel %vm142, %v124, 0
    %v337 = vsel %vm142, %v125, 0
    %339 = vmatprep.subr.mxu0 %v312
    %340 = vmatpush1.msra.mxu0 %v311
    %341 = vmatprep.subr.mxu0 %v316
    %342 = vmatpush1.msra.mxu0 %v315
    %343 = vmatprep.subr.mxu0 %v320
    %344 = vmatpush1.msra.mxu0 %v319
    %345 = vmatprep.subr.mxu0 %v324
    %346 = vmatpush1.msra.mxu0 %v323
    %347 = vmatprep.subr.mxu0 0.0
    %348 = vmatpush1.msra.mxu0 0.0
    %349 = vmatprep.subr.mxu0 0.0
    %350 = vmatpush1.msra.mxu0 0.0
    %351 = vmatprep.subr.mxu0 0.0
    %352 = vmatpush1.msra.mxu0 0.0
    %353 = vmatprep.subr.mxu0 0.0
    %354 = vmatpush1.msra.mxu0 0.0
    %355 = vmatprep.subr.mxu0 0.0
    %356 = vmatpush1.msra.mxu0 0.0
    %357 = vmatprep.subr.mxu0 0.0
    %358 = vmatpush1.msra.mxu0 0.0
    %359 = vmatprep.subr.mxu0 0.0
    %360 = vmatpush1.msra.mxu0 0.0
    %361 = vmatprep.subr.mxu0 0.0
    %362 = vmatpush1.msra.mxu0 0.0
    %363 = vmatprep.subr.mxu0 0.0
    %364 = vmatpush1.msra.mxu0 0.0
    %365 = vmatprep.subr.mxu0 0.0
    %366 = vmatpush1.msra.mxu0 0.0
    %367 = vmatprep.subr.mxu0 0.0
    %368 = vmatpush1.msra.mxu0 0.0
    %369 = vmatprep.subr.mxu0 0.0
    %370 = vmatpush1.msra.mxu0 0.0
    %371 = vmatprep.subr.mxu0 0.0
    %372 = vmatpush1.msra.mxu0 0.0
    %373 = vmatprep.subr.mxu0 0.0
    %374 = vmatpush1.msra.mxu0 0.0
    %375 = vmatprep.subr.mxu0 0.0
    %376 = vmatpush1.msra.mxu0 0.0
    %377 = vmatprep.subr.mxu0 0.0
    %378 = vmatpush1.msra.mxu0 0.0
    %379 = vmatprep.subr.mxu0 0.0
    %380 = vmatpush1.msra.mxu0 0.0
    %381 = vmatprep.subr.mxu0 0.0
    %382 = vmatpush1.msra.mxu0 0.0
    %383 = vmatprep.subr.mxu0 0.0
    %384 = vmatpush1.msra.mxu0 0.0
    %385 = vmatprep.subr.mxu0 0.0
    %386 = vmatpush1.msra.mxu0 0.0
    %387 = vmatprep.subr.mxu0 0.0
    %388 = vmatpush1.msra.mxu0 0.0
    %389 = vmatprep.subr.mxu0 0.0
    %390 = vmatpush1.msra.mxu0 0.0
    %391 = vmatprep.subr.mxu0 0.0
    %392 = vmatpush1.msra.mxu0 0.0
    %393 = vmatprep.subr.mxu0 0.0
    %394 = vmatpush1.msra.mxu0 0.0
    %395 = vmatprep.subr.mxu0 0.0
    %396 = vmatpush1.msra.mxu0 0.0
    %397 = vmatprep.subr.mxu0 0.0
    %398 = vmatpush1.msra.mxu0 0.0
    %399 = vmatprep.subr.mxu0 0.0
    %400 = vmatpush1.msra.mxu0 0.0
    %401 = vmatprep.subr.mxu0 0.0
    %402 = vmatpush1.msra.mxu0 0.0
    %403 = vmatprep.mubr.f32.mxu0 0.0
    %404 = vmatmul.mubr.f32.gmra.mrb[0].mxu0 %v328
    %v405 = vpop.f32.mrb[0].mxu0
    %v406 = vadd.f32 0.0, %v405
    %v407 = vpop.f32.mrb[0].mxu0
    %v408 = vadd.f32 0.0, %v407
    %409 = vmatprep.mubr.f32.mxu0 0.0
    %410 = vmatmul.mubr.f32.gmra.mrb[0].mxu0 %v331
    %v411 = vpop.f32.mrb[0].mxu0
    %v412 = vadd.f32 0.0, %v411
    %v413 = vpop.f32.mrb[0].mxu0
    %v414 = vadd.f32 0.0, %v413
    %415 = vmatprep.mubr.f32.mxu0 0.0
    %416 = vmatmul.mubr.f32.gmra.mrb[0].mxu0 %v334
    %v417 = vpop.f32.mrb[0].mxu0
    %v418 = vadd.f32 0.0, %v417
    %v419 = vpop.f32.mrb[0].mxu0
    %v420 = vadd.f32 0.0, %v419
    %421 = vmatprep.mubr.f32.mxu0 0.0
    %422 = vmatmul.mubr.f32.gmra.mrb[0].mxu0 %v337
    %v423 = vpop.f32.mrb[0].mxu0
    %v424 = vadd.f32 0.0, %v423
    %v425 = vpop.f32.mrb[0].mxu0
    %v426 = vadd.f32 0.0, %v425
    %427 = vdwg.mxu0
    %428 = vmatprep.subr.mxu0 %v314
    %429 = vmatpush1.msra.mxu0 %v313
    %430 = vmatprep.subr.mxu0 %v318
    %431 = vmatpush1.msra.mxu0 %v317
    %432 = vmatprep.subr.mxu0 %v322
    %433 = vmatpush1.msra.mxu0 %v321
    %434 = vmatprep.subr.mxu0 %v326
    %435 = vmatpush1.msra.mxu0 %v325
    %436 = vmatprep.subr.mxu0 0.0
    %437 = vmatpush1.msra.mxu0 0.0
    %438 = vmatprep.subr.mxu0 0.0
    %439 = vmatpush1.msra.mxu0 0.0
    %440 = vmatprep.subr.mxu0 0.0
    %441 = vmatpush1.msra.mxu0 0.0
    %442 = vmatprep.subr.mxu0 0.0
    %443 = vmatpush1.msra.mxu0 0.0
    %444 = vmatprep.subr.mxu0 0.0
    %445 = vmatpush1.msra.mxu0 0.0
    %446 = vmatprep.subr.mxu0 0.0
    %447 = vmatpush1.msra.mxu0 0.0
    %448 = vmatprep.subr.mxu0 0.0
    %449 = vmatpush1.msra.mxu0 0.0
    %450 = vmatprep.subr.mxu0 0.0
    %451 = vmatpush1.msra.mxu0 0.0
    %452 = vmatprep.subr.mxu0 0.0
    %453 = vmatpush1.msra.mxu0 0.0
    %454 = vmatprep.subr.mxu0 0.0
    %455 = vmatpush1.msra.mxu0 0.0
    %456 = vmatprep.subr.mxu0 0.0
    %457 = vmatpush1.msra.mxu0 0.0
    %458 = vmatprep.subr.mxu0 0.0
    %459 = vmatpush1.msra.mxu0 0.0
    %460 = vmatprep.subr.mxu0 0.0
    %461 = vmatpush1.msra.mxu0 0.0
    %462 = vmatprep.subr.mxu0 0.0
    %463 = vmatpush1.msra.mxu0 0.0
    %464 = vmatprep.subr.mxu0 0.0
    %465 = vmatpush1.msra.mxu0 0.0
    %466 = vmatprep.subr.mxu0 0.0
    %467 = vmatpush1.msra.mxu0 0.0
    %468 = vmatprep.subr.mxu0 0.0
    %469 = vmatpush1.msra.mxu0 0.0
    %470 = vmatprep.subr.mxu0 0.0
    %471 = vmatpush1.msra.mxu0 0.0
    %472 = vmatprep.subr.mxu0 0.0
    %473 = vmatpush1.msra.mxu0 0.0
    %474 = vmatprep.subr.mxu0 0.0
    %475 = vmatpush1.msra.mxu0 0.0
    %476 = vmatprep.subr.mxu0 0.0
    %477 = vmatpush1.msra.mxu0 0.0
    %478 = vmatprep.subr.mxu0 0.0
    %479 = vmatpush1.msra.mxu0 0.0
    %480 = vmatprep.subr.mxu0 0.0
    %481 = vmatpush1.msra.mxu0 0.0
    %482 = vmatprep.subr.mxu0 0.0
    %483 = vmatpush1.msra.mxu0 0.0
    %484 = vmatprep.subr.mxu0 0.0
    %485 = vmatpush1.msra.mxu0 0.0
    %486 = vmatprep.subr.mxu0 0.0
    %487 = vmatpush1.msra.mxu0 0.0
    %488 = vmatprep.subr.mxu0 0.0
    %489 = vmatpush1.msra.mxu0 0.0
    %490 = vmatprep.subr.mxu0 0.0
    %491 = vmatpush1.msra.mxu0 0.0
    %492 = vmatprep.mubr.f32.mxu0 0.0
    %493 = vmatmul.mubr.f32.gmra.mrb[0].mxu0 %v328
    %v494 = vpop.f32.mrb[0].mxu0
    %v495 = vadd.f32 0.0, %v494
    %v496 = vpop.f32.mrb[0].mxu0
    %v497 = vadd.f32 0.0, %v496
    %498 = vmatprep.mubr.f32.mxu0 0.0
    %499 = vmatmul.mubr.f32.gmra.mrb[0].mxu0 %v331
    %v500 = vpop.f32.mrb[0].mxu0
    %v501 = vadd.f32 0.0, %v500
    %v502 = vpop.f32.mrb[0].mxu0
    %v503 = vadd.f32 0.0, %v502
    %504 = vmatprep.mubr.f32.mxu0 0.0
    %505 = vmatmul.mubr.f32.gmra.mrb[0].mxu0 %v334
    %v506 = vpop.f32.mrb[0].mxu0
    %v507 = vadd.f32 0.0, %v506
    %v508 = vpop.f32.mrb[0].mxu0
    %v509 = vadd.f32 0.0, %v508
    %510 = vmatprep.mubr.f32.mxu0 0.0
    %511 = vmatmul.mubr.f32.gmra.mrb[0].mxu0 %v337
    %v512 = vpop.f32.mrb[0].mxu0
    %v513 = vadd.f32 0.0, %v512
    %v514 = vpop.f32.mrb[0].mxu0
    %v515 = vadd.f32 0.0, %v514
    %516 = vdwg.mxu0
    %v517 = vld [vmem:[#allocation11] sm:$0xff]
    %v518 = vld [vmem:[#allocation11 + $0x8] sm:$0xff]
    %v519 = vld [vmem:[#allocation11 + $0x10] sm:$0xff]
    %v520 = vld [vmem:[#allocation11 + $0x18] sm:$0xff]
    %v521 = vld [vmem:[#allocation11 + $0x20] sm:$0xff]
    %v522 = vld [vmem:[#allocation11 + $0x28] sm:$0xff]
    %v523 = vld [vmem:[#allocation11 + $0x30] sm:$0xff]
    %v524 = vld [vmem:[#allocation11 + $0x38] sm:$0xff]
    %v525 = vld [vmem:[#allocation11 + $0x40] sm:$0xff]
    %v526 = vld [vmem:[#allocation11 + $0x48] sm:$0xff]
    %v527 = vld [vmem:[#allocation11 + $0x50] sm:$0xff]
    %v528 = vld [vmem:[#allocation11 + $0x58] sm:$0xff]
    %v529 = vld [vmem:[#allocation11 + $0x60] sm:$0xff]
    %v530 = vld [vmem:[#allocation11 + $0x68] sm:$0xff]
    %v531 = vld [vmem:[#allocation11 + $0x70] sm:$0xff]
    %v532 = vld [vmem:[#allocation11 + $0x78] sm:$0xff]
    %533 = vmatprep.subr.mxu0 %v518
    %534 = vmatpush1.msra.mxu0 %v517
    %535 = vmatprep.subr.mxu0 %v522
    %536 = vmatpush1.msra.mxu0 %v521
    %537 = vmatprep.subr.mxu0 %v526
    %538 = vmatpush1.msra.mxu0 %v525
    %539 = vmatprep.subr.mxu0 %v530
    %540 = vmatpush1.msra.mxu0 %v529
    %541 = vmatprep.subr.mxu0 0.0
    %542 = vmatpush1.msra.mxu0 0.0
    %543 = vmatprep.subr.mxu0 0.0
    %544 = vmatpush1.msra.mxu0 0.0
    %545 = vmatprep.subr.mxu0 0.0
    %546 = vmatpush1.msra.mxu0 0.0
    %547 = vmatprep.subr.mxu0 0.0
    %548 = vmatpush1.msra.mxu0 0.0
    %549 = vmatprep.subr.mxu0 0.0
    %550 = vmatpush1.msra.mxu0 0.0
    %551 = vmatprep.subr.mxu0 0.0
    %552 = vmatpush1.msra.mxu0 0.0
    %553 = vmatprep.subr.mxu0 0.0
    %554 = vmatpush1.msra.mxu0 0.0
    %555 = vmatprep.subr.mxu0 0.0
    %556 = vmatpush1.msra.mxu0 0.0
    %557 = vmatprep.subr.mxu0 0.0
    %558 = vmatpush1.msra.mxu0 0.0
    %559 = vmatprep.subr.mxu0 0.0
    %560 = vmatpush1.msra.mxu0 0.0
    %561 = vmatprep.subr.mxu0 0.0
    %562 = vmatpush1.msra.mxu0 0.0
    %563 = vmatprep.subr.mxu0 0.0
    %564 = vmatpush1.msra.mxu0 0.0
    %565 = vmatprep.subr.mxu0 0.0
    %566 = vmatpush1.msra.mxu0 0.0
    %567 = vmatprep.subr.mxu0 0.0
    %568 = vmatpush1.msra.mxu0 0.0
    %569 = vmatprep.subr.mxu0 0.0
    %570 = vmatpush1.msra.mxu0 0.0
    %571 = vmatprep.subr.mxu0 0.0
    %572 = vmatpush1.msra.mxu0 0.0
    %573 = vmatprep.subr.mxu0 0.0
    %574 = vmatpush1.msra.mxu0 0.0
    %575 = vmatprep.subr.mxu0 0.0
    %576 = vmatpush1.msra.mxu0 0.0
    %577 = vmatprep.subr.mxu0 0.0
    %578 = vmatpush1.msra.mxu0 0.0
    %579 = vmatprep.subr.mxu0 0.0
    %580 = vmatpush1.msra.mxu0 0.0
    %581 = vmatprep.subr.mxu0 0.0
    %582 = vmatpush1.msra.mxu0 0.0
    %583 = vmatprep.subr.mxu0 0.0
    %584 = vmatpush1.msra.mxu0 0.0
    %585 = vmatprep.subr.mxu0 0.0
    %586 = vmatpush1.msra.mxu0 0.0
    %587 = vmatprep.subr.mxu0 0.0
    %588 = vmatpush1.msra.mxu0 0.0
    %589 = vmatprep.subr.mxu0 0.0
    %590 = vmatpush1.msra.mxu0 0.0
    %591 = vmatprep.subr.mxu0 0.0
    %592 = vmatpush1.msra.mxu0 0.0
    %593 = vmatprep.subr.mxu0 0.0
    %594 = vmatpush1.msra.mxu0 0.0
    %595 = vmatprep.subr.mxu0 0.0
    %596 = vmatpush1.msra.mxu0 0.0
    %597 = vmatprep.mubr.f32.mxu0 0.0
    %598 = vmatmul.mubr.f32.gmra.mrb[0].mxu0 %v328
    %v599 = vpop.f32.mrb[0].mxu0
    %v600 = vadd.f32 0.0, %v599
    %v601 = vpop.f32.mrb[0].mxu0
    %v602 = vadd.f32 0.0, %v601
    %603 = vmatprep.mubr.f32.mxu0 0.0
    %604 = vmatmul.mubr.f32.gmra.mrb[0].mxu0 %v331
    %v605 = vpop.f32.mrb[0].mxu0
    %v606 = vadd.f32 0.0, %v605
    %v607 = vpop.f32.mrb[0].mxu0
    %v608 = vadd.f32 0.0, %v607
    %609 = vmatprep.mubr.f32.mxu0 0.0
    %610 = vmatmul.mubr.f32.gmra.mrb[0].mxu0 %v334
    %v611 = vpop.f32.mrb[0].mxu0
    %v612 = vadd.f32 0.0, %v611
    %v613 = vpop.f32.mrb[0].mxu0
    %v614 = vadd.f32 0.0, %v613
    %615 = vmatprep.mubr.f32.mxu0 0.0
    %616 = vmatmul.mubr.f32.gmra.mrb[0].mxu0 %v337
    %v617 = vpop.f32.mrb[0].mxu0
    %v618 = vadd.f32 0.0, %v617
    %v619 = vpop.f32.mrb[0].mxu0
    %v620 = vadd.f32 0.0, %v619
    %621 = vdwg.mxu0
    %622 = vmatprep.subr.mxu0 %v520
    %623 = vmatpush1.msra.mxu0 %v519
    %624 = vmatprep.subr.mxu0 %v524
    %625 = vmatpush1.msra.mxu0 %v523
    %626 = vmatprep.subr.mxu0 %v528
    %627 = vmatpush1.msra.mxu0 %v527
    %628 = vmatprep.subr.mxu0 %v532
    %629 = vmatpush1.msra.mxu0 %v531
    %630 = vmatprep.subr.mxu0 0.0
    %631 = vmatpush1.msra.mxu0 0.0
    %632 = vmatprep.subr.mxu0 0.0
    %633 = vmatpush1.msra.mxu0 0.0
    %634 = vmatprep.subr.mxu0 0.0
    %635 = vmatpush1.msra.mxu0 0.0
    %636 = vmatprep.subr.mxu0 0.0
    %637 = vmatpush1.msra.mxu0 0.0
    %638 = vmatprep.subr.mxu0 0.0
    %639 = vmatpush1.msra.mxu0 0.0
    %640 = vmatprep.subr.mxu0 0.0
    %641 = vmatpush1.msra.mxu0 0.0
    %642 = vmatprep.subr.mxu0 0.0
    %643 = vmatpush1.msra.mxu0 0.0
    %644 = vmatprep.subr.mxu0 0.0
    %645 = vmatpush1.msra.mxu0 0.0
    %646 = vmatprep.subr.mxu0 0.0
    %647 = vmatpush1.msra.mxu0 0.0
    %648 = vmatprep.subr.mxu0 0.0
    %649 = vmatpush1.msra.mxu0 0.0
    %650 = vmatprep.subr.mxu0 0.0
    %651 = vmatpush1.msra.mxu0 0.0
    %652 = vmatprep.subr.mxu0 0.0
    %653 = vmatpush1.msra.mxu0 0.0
    %654 = vmatprep.subr.mxu0 0.0
    %655 = vmatpush1.msra.mxu0 0.0
    %656 = vmatprep.subr.mxu0 0.0
    %657 = vmatpush1.msra.mxu0 0.0
    %658 = vmatprep.subr.mxu0 0.0
    %659 = vmatpush1.msra.mxu0 0.0
    %660 = vmatprep.subr.mxu0 0.0
    %661 = vmatpush1.msra.mxu0 0.0
    %662 = vmatprep.subr.mxu0 0.0
    %663 = vmatpush1.msra.mxu0 0.0
    %664 = vmatprep.subr.mxu0 0.0
    %665 = vmatpush1.msra.mxu0 0.0
    %666 = vmatprep.subr.mxu0 0.0
    %667 = vmatpush1.msra.mxu0 0.0
    %668 = vmatprep.subr.mxu0 0.0
    %669 = vmatpush1.msra.mxu0 0.0
    %670 = vmatprep.subr.mxu0 0.0
    %671 = vmatpush1.msra.mxu0 0.0
    %672 = vmatprep.subr.mxu0 0.0
    %673 = vmatpush1.msra.mxu0 0.0
    %674 = vmatprep.subr.mxu0 0.0
    %675 = vmatpush1.msra.mxu0 0.0
    %676 = vmatprep.subr.mxu0 0.0
    %677 = vmatpush1.msra.mxu0 0.0
    %678 = vmatprep.subr.mxu0 0.0
    %679 = vmatpush1.msra.mxu0 0.0
    %680 = vmatprep.subr.mxu0 0.0
    %681 = vmatpush1.msra.mxu0 0.0
    %682 = vmatprep.subr.mxu0 0.0
    %683 = vmatpush1.msra.mxu0 0.0
    %684 = vmatprep.subr.mxu0 0.0
    %685 = vmatpush1.msra.mxu0 0.0
    %686 = vmatprep.mubr.f32.mxu0 0.0
    %687 = vmatmul.mubr.f32.gmra.mrb[0].mxu0 %v328
    %v688 = vpop.f32.mrb[0].mxu0
    %v689 = vadd.f32 0.0, %v688
    %v690 = vpop.f32.mrb[0].mxu0
    %v691 = vadd.f32 0.0, %v690
    %692 = vmatprep.mubr.f32.mxu0 0.0
    %693 = vmatmul.mubr.f32.gmra.mrb[0].mxu0 %v331
    %v694 = vpop.f32.mrb[0].mxu0
    %v695 = vadd.f32 0.0, %v694
    %v696 = vpop.f32.mrb[0].mxu0
    %v697 = vadd.f32 0.0, %v696
    %698 = vmatprep.mubr.f32.mxu0 0.0
    %699 = vmatmul.mubr.f32.gmra.mrb[0].mxu0 %v334
    %v700 = vpop.f32.mrb[0].mxu0
    %v701 = vadd.f32 0.0, %v700
    %v702 = vpop.f32.mrb[0].mxu0
    %v703 = vadd.f32 0.0, %v702
    %704 = vmatprep.mubr.f32.mxu0 0.0
    %705 = vmatmul.mubr.f32.gmra.mrb[0].mxu0 %v337
    %v706 = vpop.f32.mrb[0].mxu0
    %v707 = vadd.f32 0.0, %v706
    %v708 = vpop.f32.mrb[0].mxu0
    %v709 = vadd.f32 0.0, %v708
    %710 = vdwg.mxu0
    %711 = vmatprep.subr.mxu0 0.0
    %712 = vmatpush1.xpose.msra.mxu0 %v406
    %713 = vmatprep.subr.mxu0 0.0
    %714 = vmatpush1.xpose.msra.mxu0 %v412
    %715 = vmatprep.subr.mxu0 0.0
    %716 = vmatpush1.xpose.msra.mxu0 0.0
    %717 = vmatprep.subr.mxu0 0.0
    %718 = vmatpush1.xpose.msra.mxu0 0.0
    %719 = vmatprep.subr.mxu0 0.0
    %720 = vmatpush1.xpose.msra.mxu0 0.0
    %721 = vmatprep.subr.mxu0 0.0
    %722 = vmatpush1.xpose.msra.mxu0 0.0
    %723 = vmatprep.subr.mxu0 0.0
    %724 = vmatpush1.xpose.msra.mxu0 0.0
    %725 = vmatprep.subr.mxu0 0.0
    %726 = vmatpush1.xpose.msra.mxu0 0.0
    %727 = vmatprep.subr.mxu0 0.0
    %728 = vmatpush1.xpose.msra.mxu0 0.0
    %729 = vmatprep.subr.mxu0 0.0
    %730 = vmatpush1.xpose.msra.mxu0 0.0
    %731 = vmatprep.subr.mxu0 0.0
    %732 = vmatpush1.xpose.msra.mxu0 0.0
    %733 = vmatprep.subr.mxu0 0.0
    %734 = vmatpush1.xpose.msra.mxu0 0.0
    %735 = vmatprep.subr.mxu0 0.0
    %736 = vmatpush1.xpose.msra.mxu0 0.0
    %737 = vmatprep.subr.mxu0 0.0
    %738 = vmatpush1.xpose.msra.mxu0 0.0
    %739 = vmatprep.subr.mxu0 0.0
    %740 = vmatpush1.xpose.msra.mxu0 0.0
    %741 = vmatprep.subr.mxu0 0.0
    %742 = vmatpush1.xpose.msra.mxu0 0.0
    %743 = vmatprep.subr.mxu0 0.0
    %744 = vmatpush1.xpose.msra.mxu0 0.0
    %745 = vmatprep.subr.mxu0 0.0
    %746 = vmatpush1.xpose.msra.mxu0 0.0
    %747 = vmatprep.subr.mxu0 0.0
    %748 = vmatpush1.xpose.msra.mxu0 0.0
    %749 = vmatprep.subr.mxu0 0.0
    %750 = vmatpush1.xpose.msra.mxu0 0.0
    %751 = vmatprep.subr.mxu0 0.0
    %752 = vmatpush1.xpose.msra.mxu0 0.0
    %753 = vmatprep.subr.mxu0 0.0
    %754 = vmatpush1.xpose.msra.mxu0 0.0
    %755 = vmatprep.subr.mxu0 0.0
    %756 = vmatpush1.xpose.msra.mxu0 0.0
    %757 = vmatprep.subr.mxu0 0.0
    %758 = vmatpush1.xpose.msra.mxu0 0.0
    %759 = vmatprep.subr.mxu0 0.0
    %760 = vmatpush1.xpose.msra.mxu0 0.0
    %761 = vmatprep.subr.mxu0 0.0
    %762 = vmatpush1.xpose.msra.mxu0 0.0
    %763 = vmatprep.subr.mxu0 0.0
    %764 = vmatpush1.xpose.msra.mxu0 0.0
    %765 = vmatprep.subr.mxu0 0.0
    %766 = vmatpush1.xpose.msra.mxu0 0.0
    %767 = vmatprep.subr.mxu0 0.0
    %768 = vmatpush1.xpose.msra.mxu0 0.0
    %769 = vmatprep.subr.mxu0 0.0
    %770 = vmatpush1.xpose.msra.mxu0 0.0
    %771 = vmatprep.subr.mxu0 0.0
    %772 = vmatpush1.xpose.msra.mxu0 0.0
    %773 = vmatprep.subr.mxu0 0.0
    %774 = vmatpush1.xpose.msra.mxu0 0.0
    %775 = vmatprep.mubr.f32.mxu0 0.0
    %776 = vmatmul.mubr.f32.gmra.mrb[0].mxu0 %v303
    %v777 = vpop.f32.mrb[0].mxu0
    %v778 = vadd.f32 0.0, %v777
    %v779 = vpop.f32.mrb[0].mxu0
    %780 = vdwg.mxu0
    %vm781 = vcmask 130048
    %v782 = vsel %vm781, %v778, -inf
    %783 = vmax.xlane.f32.xlu0 %v782
    %v784 = vpop.xlane.xlu0 %783
    %v785 = vsub.f32 %v778, %v784
    %v786 = vmul.f32 %v785, 1.442695
    %v787 = vpow.pop %v786
    %v788 = vsel %vm781, %v787, 0.0
    %789 = vadd.xlane.f32.xlu0 %v788
    %v790 = vpop.xlane.xlu0 %789
    %v792 = vsel %vm781, %v787, 0
    %794 = vmatprep.subr.mxu0 0.0
    %795 = vmatpush1.msra.mxu0 %v600
    %796 = vmatprep.subr.mxu0 0.0
    %797 = vmatpush1.msra.mxu0 %v606
    %798 = vmatprep.subr.mxu0 0.0
    %799 = vmatpush1.msra.mxu0 0.0
    %800 = vmatprep.subr.mxu0 0.0
    %801 = vmatpush1.msra.mxu0 0.0
    %802 = vmatprep.subr.mxu0 0.0
    %803 = vmatpush1.msra.mxu0 0.0
    %804 = vmatprep.subr.mxu0 0.0
    %805 = vmatpush1.msra.mxu0 0.0
    %806 = vmatprep.subr.mxu0 0.0
    %807 = vmatpush1.msra.mxu0 0.0
    %808 = vmatprep.subr.mxu0 0.0
    %809 = vmatpush1.msra.mxu0 0.0
    %810 = vmatprep.subr.mxu0 0.0
    %811 = vmatpush1.msra.mxu0 0.0
    %812 = vmatprep.subr.mxu0 0.0
    %813 = vmatpush1.msra.mxu0 0.0
    %814 = vmatprep.subr.mxu0 0.0
    %815 = vmatpush1.msra.mxu0 0.0
    %816 = vmatprep.subr.mxu0 0.0
    %817 = vmatpush1.msra.mxu0 0.0
    %818 = vmatprep.subr.mxu0 0.0
    %819 = vmatpush1.msra.mxu0 0.0
    %820 = vmatprep.subr.mxu0 0.0
    %821 = vmatpush1.msra.mxu0 0.0
    %822 = vmatprep.subr.mxu0 0.0
    %823 = vmatpush1.msra.mxu0 0.0
    %824 = vmatprep.subr.mxu0 0.0
    %825 = vmatpush1.msra.mxu0 0.0
    %826 = vmatprep.subr.mxu0 0.0
    %827 = vmatpush1.msra.mxu0 0.0
    %828 = vmatprep.subr.mxu0 0.0
    %829 = vmatpush1.msra.mxu0 0.0
    %830 = vmatprep.subr.mxu0 0.0
    %831 = vmatpush1.msra.mxu0 0.0
    %832 = vmatprep.subr.mxu0 0.0
    %833 = vmatpush1.msra.mxu0 0.0
    %834 = vmatprep.subr.mxu0 0.0
    %835 = vmatpush1.msra.mxu0 0.0
    %836 = vmatprep.subr.mxu0 0.0
    %837 = vmatpush1.msra.mxu0 0.0
    %838 = vmatprep.subr.mxu0 0.0
    %839 = vmatpush1.msra.mxu0 0.0
    %840 = vmatprep.subr.mxu0 0.0
    %841 = vmatpush1.msra.mxu0 0.0
    %842 = vmatprep.subr.mxu0 0.0
    %843 = vmatpush1.msra.mxu0 0.0
    %844 = vmatprep.subr.mxu0 0.0
    %845 = vmatpush1.msra.mxu0 0.0
    %846 = vmatprep.subr.mxu0 0.0
    %847 = vmatpush1.msra.mxu0 0.0
    %848 = vmatprep.subr.mxu0 0.0
    %849 = vmatpush1.msra.mxu0 0.0
    %850 = vmatprep.subr.mxu0 0.0
    %851 = vmatpush1.msra.mxu0 0.0
    %852 = vmatprep.subr.mxu0 0.0
    %853 = vmatpush1.msra.mxu0 0.0
    %854 = vmatprep.subr.mxu0 0.0
    %855 = vmatpush1.msra.mxu0 0.0
    %856 = vmatprep.subr.mxu0 0.0
    %857 = vmatpush1.msra.mxu0 0.0
    %858 = vmatprep.mubr.f32.mxu0 0.0
    %859 = vmatmul.mubr.f32.gmra.mrb[0].mxu0 %v792
    %v860 = vpop.f32.mrb[0].mxu0
    %v861 = vadd.f32 0.0, %v860
    %v862 = vpop.f32.mrb[0].mxu0
    %863 = vdwg.mxu0
    %v864 = vrcp.pop %v790
    %v865 = vmul.f32 %v861, %v864
    %866 = vst [vmem:[#allocation2] sm:$0xff] %v865
    %867 = vmatprep.subr.mxu0 0.0
    %868 = vmatpush1.xpose.msra.mxu0 %v408
    %869 = vmatprep.subr.mxu0 0.0
    %870 = vmatpush1.xpose.msra.mxu0 %v414
    %871 = vmatprep.subr.mxu0 0.0
    %872 = vmatpush1.xpose.msra.mxu0 0.0
    %873 = vmatprep.subr.mxu0 0.0
    %874 = vmatpush1.xpose.msra.mxu0 0.0
    %875 = vmatprep.subr.mxu0 0.0
    %876 = vmatpush1.xpose.msra.mxu0 0.0
    %877 = vmatprep.subr.mxu0 0.0
    %878 = vmatpush1.xpose.msra.mxu0 0.0
    %879 = vmatprep.subr.mxu0 0.0
    %880 = vmatpush1.xpose.msra.mxu0 0.0
    %881 = vmatprep.subr.mxu0 0.0
    %882 = vmatpush1.xpose.msra.mxu0 0.0
    %883 = vmatprep.subr.mxu0 0.0
    %884 = vmatpush1.xpose.msra.mxu0 0.0
    %885 = vmatprep.subr.mxu0 0.0
    %886 = vmatpush1.xpose.msra.mxu0 0.0
    %887 = vmatprep.subr.mxu0 0.0
    %888 = vmatpush1.xpose.msra.mxu0 0.0
    %889 = vmatprep.subr.mxu0 0.0
    %890 = vmatpush1.xpose.msra.mxu0 0.0
    %891 = vmatprep.subr.mxu0 0.0
    %892 = vmatpush1.xpose.msra.mxu0 0.0
    %893 = vmatprep.subr.mxu0 0.0
    %894 = vmatpush1.xpose.msra.mxu0 0.0
    %895 = vmatprep.subr.mxu0 0.0
    %896 = vmatpush1.xpose.msra.mxu0 0.0
    %897 = vmatprep.subr.mxu0 0.0
    %898 = vmatpush1.xpose.msra.mxu0 0.0
    %899 = vmatprep.subr.mxu0 0.0
    %900 = vmatpush1.xpose.msra.mxu0 0.0
    %901 = vmatprep.subr.mxu0 0.0
    %902 = vmatpush1.xpose.msra.mxu0 0.0
    %903 = vmatprep.subr.mxu0 0.0
    %904 = vmatpush1.xpose.msra.mxu0 0.0
    %905 = vmatprep.subr.mxu0 0.0
    %906 = vmatpush1.xpose.msra.mxu0 0.0
    %907 = vmatprep.subr.mxu0 0.0
    %908 = vmatpush1.xpose.msra.mxu0 0.0
    %909 = vmatprep.subr.mxu0 0.0
    %910 = vmatpush1.xpose.msra.mxu0 0.0
    %911 = vmatprep.subr.mxu0 0.0
    %912 = vmatpush1.xpose.msra.mxu0 0.0
    %913 = vmatprep.subr.mxu0 0.0
    %914 = vmatpush1.xpose.msra.mxu0 0.0
    %915 = vmatprep.subr.mxu0 0.0
    %916 = vmatpush1.xpose.msra.mxu0 0.0
    %917 = vmatprep.subr.mxu0 0.0
    %918 = vmatpush1.xpose.msra.mxu0 0.0
    %919 = vmatprep.subr.mxu0 0.0
    %920 = vmatpush1.xpose.msra.mxu0 0.0
    %921 = vmatprep.subr.mxu0 0.0
    %922 = vmatpush1.xpose.msra.mxu0 0.0
    %923 = vmatprep.subr.mxu0 0.0
    %924 = vmatpush1.xpose.msra.mxu0 0.0
    %925 = vmatprep.subr.mxu0 0.0
    %926 = vmatpush1.xpose.msra.mxu0 0.0
    %927 = vmatprep.subr.mxu0 0.0
    %928 = vmatpush1.xpose.msra.mxu0 0.0
    %929 = vmatprep.subr.mxu0 0.0
    %930 = vmatpush1.xpose.msra.mxu0 0.0
    %931 = vmatprep.mubr.f32.mxu0 0.0
    %932 = vmatmul.mubr.f32.gmra.mrb[0].mxu0 %v304
    %v933 = vpop.f32.mrb[0].mxu0
    %v934 = vadd.f32 0.0, %v933
    %v935 = vpop.f32.mrb[0].mxu0
    %936 = vdwg.mxu0
    %v937 = vsel %vm781, %v934, -inf
    %938 = vmax.xlane.f32.xlu0 %v937
    %v939 = vpop.xlane.xlu0 %938
    %v940 = vsub.f32 %v934, %v939
    %v941 = vmul.f32 %v940, 1.442695
    %v942 = vpow.pop %v941
    %v943 = vsel %vm781, %v942, 0.0
    %944 = vadd.xlane.f32.xlu0 %v943
    %v945 = vpop.xlane.xlu0 %944
    %v947 = vsel %vm781, %v942, 0
    %949 = vmatprep.subr.mxu0 0.0
    %950 = vmatpush1.msra.mxu0 %v602
    %951 = vmatprep.subr.mxu0 0.0
    %952 = vmatpush1.msra.mxu0 %v608
    %953 = vmatprep.subr.mxu0 0.0
    %954 = vmatpush1.msra.mxu0 0.0
    %955 = vmatprep.subr.mxu0 0.0
    %956 = vmatpush1.msra.mxu0 0.0
    %957 = vmatprep.subr.mxu0 0.0
    %958 = vmatpush1.msra.mxu0 0.0
    %959 = vmatprep.subr.mxu0 0.0
    %960 = vmatpush1.msra.mxu0 0.0
    %961 = vmatprep.subr.mxu0 0.0
    %962 = vmatpush1.msra.mxu0 0.0
    %963 = vmatprep.subr.mxu0 0.0
    %964 = vmatpush1.msra.mxu0 0.0
    %965 = vmatprep.subr.mxu0 0.0
    %966 = vmatpush1.msra.mxu0 0.0
    %967 = vmatprep.subr.mxu0 0.0
    %968 = vmatpush1.msra.mxu0 0.0
    %969 = vmatprep.subr.mxu0 0.0
    %970 = vmatpush1.msra.mxu0 0.0
    %971 = vmatprep.subr.mxu0 0.0
    %972 = vmatpush1.msra.mxu0 0.0
    %973 = vmatprep.subr.mxu0 0.0
    %974 = vmatpush1.msra.mxu0 0.0
    %975 = vmatprep.subr.mxu0 0.0
    %976 = vmatpush1.msra.mxu0 0.0
    %977 = vmatprep.subr.mxu0 0.0
    %978 = vmatpush1.msra.mxu0 0.0
    %979 = vmatprep.subr.mxu0 0.0
    %980 = vmatpush1.msra.mxu0 0.0
    %981 = vmatprep.subr.mxu0 0.0
    %982 = vmatpush1.msra.mxu0 0.0
    %983 = vmatprep.subr.mxu0 0.0
    %984 = vmatpush1.msra.mxu0 0.0
    %985 = vmatprep.subr.mxu0 0.0
    %986 = vmatpush1.msra.mxu0 0.0
    %987 = vmatprep.subr.mxu0 0.0
    %988 = vmatpush1.msra.mxu0 0.0
    %989 = vmatprep.subr.mxu0 0.0
    %990 = vmatpush1.msra.mxu0 0.0
    %991 = vmatprep.subr.mxu0 0.0
    %992 = vmatpush1.msra.mxu0 0.0
    %993 = vmatprep.subr.mxu0 0.0
    %994 = vmatpush1.msra.mxu0 0.0
    %995 = vmatprep.subr.mxu0 0.0
    %996 = vmatpush1.msra.mxu0 0.0
    %997 = vmatprep.subr.mxu0 0.0
    %998 = vmatpush1.msra.mxu0 0.0
    %999 = vmatprep.subr.mxu0 0.0
    %1000 = vmatpush1.msra.mxu0 0.0
    %1001 = vmatprep.subr.mxu0 0.0
    %1002 = vmatpush1.msra.mxu0 0.0
    %1003 = vmatprep.subr.mxu0 0.0
    %1004 = vmatpush1.msra.mxu0 0.0
    %1005 = vmatprep.subr.mxu0 0.0
    %1006 = vmatpush1.msra.mxu0 0.0
    %1007 = vmatprep.subr.mxu0 0.0
    %1008 = vmatpush1.msra.mxu0 0.0
    %1009 = vmatprep.subr.mxu0 0.0
    %1010 = vmatpush1.msra.mxu0 0.0
    %1011 = vmatprep.subr.mxu0 0.0
    %1012 = vmatpush1.msra.mxu0 0.0
    %1013 = vmatprep.mubr.f32.mxu0 0.0
    %1014 = vmatmul.mubr.f32.gmra.mrb[0].mxu0 %v947
    %v1015 = vpop.f32.mrb[0].mxu0
    %v1016 = vadd.f32 0.0, %v1015
    %v1017 = vpop.f32.mrb[0].mxu0
    %1018 = vdwg.mxu0
    %v1019 = vrcp.pop %v945
    %v1020 = vmul.f32 %v1016, %v1019
    %1021 = vst [vmem:[#allocation2 + $0x8] sm:$0xff] %v1020
    %1022 = vmatprep.subr.mxu0 0.0
    %1023 = vmatpush1.xpose.msra.mxu0 %v495
    %1024 = vmatprep.subr.mxu0 0.0
    %1025 = vmatpush1.xpose.msra.mxu0 %v501
    %1026 = vmatprep.subr.mxu0 0.0
    %1027 = vmatpush1.xpose.msra.mxu0 0.0
    %1028 = vmatprep.subr.mxu0 0.0
    %1029 = vmatpush1.xpose.msra.mxu0 0.0
    %1030 = vmatprep.subr.mxu0 0.0
    %1031 = vmatpush1.xpose.msra.mxu0 0.0
    %1032 = vmatprep.subr.mxu0 0.0
    %1033 = vmatpush1.xpose.msra.mxu0 0.0
    %1034 = vmatprep.subr.mxu0 0.0
    %1035 = vmatpush1.xpose.msra.mxu0 0.0
    %1036 = vmatprep.subr.mxu0 0.0
    %1037 = vmatpush1.xpose.msra.mxu0 0.0
    %1038 = vmatprep.subr.mxu0 0.0
    %1039 = vmatpush1.xpose.msra.mxu0 0.0
    %1040 = vmatprep.subr.mxu0 0.0
    %1041 = vmatpush1.xpose.msra.mxu0 0.0
    %1042 = vmatprep.subr.mxu0 0.0
    %1043 = vmatpush1.xpose.msra.mxu0 0.0
    %1044 = vmatprep.subr.mxu0 0.0
    %1045 = vmatpush1.xpose.msra.mxu0 0.0
    %1046 = vmatprep.subr.mxu0 0.0
    %1047 = vmatpush1.xpose.msra.mxu0 0.0
    %1048 = vmatprep.subr.mxu0 0.0
    %1049 = vmatpush1.xpose.msra.mxu0 0.0
    %1050 = vmatprep.subr.mxu0 0.0
    %1051 = vmatpush1.xpose.msra.mxu0 0.0
    %1052 = vmatprep.subr.mxu0 0.0
    %1053 = vmatpush1.xpose.msra.mxu0 0.0
    %1054 = vmatprep.subr.mxu0 0.0
    %1055 = vmatpush1.xpose.msra.mxu0 0.0
    %1056 = vmatprep.subr.mxu0 0.0
    %1057 = vmatpush1.xpose.msra.mxu0 0.0
    %1058 = vmatprep.subr.mxu0 0.0
    %1059 = vmatpush1.xpose.msra.mxu0 0.0
    %1060 = vmatprep.subr.mxu0 0.0
    %1061 = vmatpush1.xpose.msra.mxu0 0.0
    %1062 = vmatprep.subr.mxu0 0.0
    %1063 = vmatpush1.xpose.msra.mxu0 0.0
    %1064 = vmatprep.subr.mxu0 0.0
    %1065 = vmatpush1.xpose.msra.mxu0 0.0
    %1066 = vmatprep.subr.mxu0 0.0
    %1067 = vmatpush1.xpose.msra.mxu0 0.0
    %1068 = vmatprep.subr.mxu0 0.0
    %1069 = vmatpush1.xpose.msra.mxu0 0.0
    %1070 = vmatprep.subr.mxu0 0.0
    %1071 = vmatpush1.xpose.msra.mxu0 0.0
    %1072 = vmatprep.subr.mxu0 0.0
    %1073 = vmatpush1.xpose.msra.mxu0 0.0
    %1074 = vmatprep.subr.mxu0 0.0
    %1075 = vmatpush1.xpose.msra.mxu0 0.0
    %1076 = vmatprep.subr.mxu0 0.0
    %1077 = vmatpush1.xpose.msra.mxu0 0.0
    %1078 = vmatprep.subr.mxu0 0.0
    %1079 = vmatpush1.xpose.msra.mxu0 0.0
    %1080 = vmatprep.subr.mxu0 0.0
    %1081 = vmatpush1.xpose.msra.mxu0 0.0
    %1082 = vmatprep.subr.mxu0 0.0
    %1083 = vmatpush1.xpose.msra.mxu0 0.0
    %1084 = vmatprep.subr.mxu0 0.0
    %1085 = vmatpush1.xpose.msra.mxu0 0.0
    %1086 = vmatprep.mubr.f32.mxu0 0.0
    %1087 = vmatmul.mubr.f32.gmra.mrb[0].mxu0 %v305
    %v1088 = vpop.f32.mrb[0].mxu0
    %v1089 = vadd.f32 0.0, %v1088
    %v1090 = vpop.f32.mrb[0].mxu0
    %1091 = vdwg.mxu0
    %v1092 = vsel %vm781, %v1089, -inf
    %1093 = vmax.xlane.f32.xlu0 %v1092
    %v1094 = vpop.xlane.xlu0 %1093
    %v1095 = vsub.f32 %v1089, %v1094
    %v1096 = vmul.f32 %v1095, 1.442695
    %v1097 = vpow.pop %v1096
    %v1098 = vsel %vm781, %v1097, 0.0
    %1099 = vadd.xlane.f32.xlu0 %v1098
    %v1100 = vpop.xlane.xlu0 %1099
    %v1102 = vsel %vm781, %v1097, 0
    %1104 = vmatprep.subr.mxu0 0.0
    %1105 = vmatpush1.msra.mxu0 %v689
    %1106 = vmatprep.subr.mxu0 0.0
    %1107 = vmatpush1.msra.mxu0 %v695
    %1108 = vmatprep.subr.mxu0 0.0
    %1109 = vmatpush1.msra.mxu0 0.0
    %1110 = vmatprep.subr.mxu0 0.0
    %1111 = vmatpush1.msra.mxu0 0.0
    %1112 = vmatprep.subr.mxu0 0.0
    %1113 = vmatpush1.msra.mxu0 0.0
    %1114 = vmatprep.subr.mxu0 0.0
    %1115 = vmatpush1.msra.mxu0 0.0
    %1116 = vmatprep.subr.mxu0 0.0
    %1117 = vmatpush1.msra.mxu0 0.0
    %1118 = vmatprep.subr.mxu0 0.0
    %1119 = vmatpush1.msra.mxu0 0.0
    %1120 = vmatprep.subr.mxu0 0.0
    %1121 = vmatpush1.msra.mxu0 0.0
    %1122 = vmatprep.subr.mxu0 0.0
    %1123 = vmatpush1.msra.mxu0 0.0
    %1124 = vmatprep.subr.mxu0 0.0
    %1125 = vmatpush1.msra.mxu0 0.0
    %1126 = vmatprep.subr.mxu0 0.0
    %1127 = vmatpush1.msra.mxu0 0.0
    %1128 = vmatprep.subr.mxu0 0.0
    %1129 = vmatpush1.msra.mxu0 0.0
    %1130 = vmatprep.subr.mxu0 0.0
    %1131 = vmatpush1.msra.mxu0 0.0
    %1132 = vmatprep.subr.mxu0 0.0
    %1133 = vmatpush1.msra.mxu0 0.0
    %1134 = vmatprep.subr.mxu0 0.0
    %1135 = vmatpush1.msra.mxu0 0.0
    %1136 = vmatprep.subr.mxu0 0.0
    %1137 = vmatpush1.msra.mxu0 0.0
    %1138 = vmatprep.subr.mxu0 0.0
    %1139 = vmatpush1.msra.mxu0 0.0
    %1140 = vmatprep.subr.mxu0 0.0
    %1141 = vmatpush1.msra.mxu0 0.0
    %1142 = vmatprep.subr.mxu0 0.0
    %1143 = vmatpush1.msra.mxu0 0.0
    %1144 = vmatprep.subr.mxu0 0.0
    %1145 = vmatpush1.msra.mxu0 0.0
    %1146 = vmatprep.subr.mxu0 0.0
    %1147 = vmatpush1.msra.mxu0 0.0
    %1148 = vmatprep.subr.mxu0 0.0
    %1149 = vmatpush1.msra.mxu0 0.0
    %1150 = vmatprep.subr.mxu0 0.0
    %1151 = vmatpush1.msra.mxu0 0.0
    %1152 = vmatprep.subr.mxu0 0.0
    %1153 = vmatpush1.msra.mxu0 0.0
    %1154 = vmatprep.subr.mxu0 0.0
    %1155 = vmatpush1.msra.mxu0 0.0
    %1156 = vmatprep.subr.mxu0 0.0
    %1157 = vmatpush1.msra.mxu0 0.0
    %1158 = vmatprep.subr.mxu0 0.0
    %1159 = vmatpush1.msra.mxu0 0.0
    %1160 = vmatprep.subr.mxu0 0.0
    %1161 = vmatpush1.msra.mxu0 0.0
    %1162 = vmatprep.subr.mxu0 0.0
    %1163 = vmatpush1.msra.mxu0 0.0
    %1164 = vmatprep.subr.mxu0 0.0
    %1165 = vmatpush1.msra.mxu0 0.0
    %1166 = vmatprep.subr.mxu0 0.0
    %1167 = vmatpush1.msra.mxu0 0.0
    %1168 = vmatprep.mubr.f32.mxu0 0.0
    %1169 = vmatmul.mubr.f32.gmra.mrb[0].mxu0 %v1102
    %v1170 = vpop.f32.mrb[0].mxu0
    %v1171 = vadd.f32 0.0, %v1170
    %v1172 = vpop.f32.mrb[0].mxu0
    %1173 = vdwg.mxu0
    %v1174 = vrcp.pop %v1100
    %v1175 = vmul.f32 %v1171, %v1174
    %1176 = vst [vmem:[#allocation2 + $0x10] sm:$0xff] %v1175
    %1177 = vmatprep.subr.mxu0 0.0
    %1178 = vmatpush1.xpose.msra.mxu0 %v497
    %1179 = vmatprep.subr.mxu0 0.0
    %1180 = vmatpush1.xpose.msra.mxu0 %v503
    %1181 = vmatprep.subr.mxu0 0.0
    %1182 = vmatpush1.xpose.msra.mxu0 0.0
    %1183 = vmatprep.subr.mxu0 0.0
    %1184 = vmatpush1.xpose.msra.mxu0 0.0
    %1185 = vmatprep.subr.mxu0 0.0
    %1186 = vmatpush1.xpose.msra.mxu0 0.0
    %1187 = vmatprep.subr.mxu0 0.0
    %1188 = vmatpush1.xpose.msra.mxu0 0.0
    %1189 = vmatprep.subr.mxu0 0.0
    %1190 = vmatpush1.xpose.msra.mxu0 0.0
    %1191 = vmatprep.subr.mxu0 0.0
    %1192 = vmatpush1.xpose.msra.mxu0 0.0
    %1193 = vmatprep.subr.mxu0 0.0
    %1194 = vmatpush1.xpose.msra.mxu0 0.0
    %1195 = vmatprep.subr.mxu0 0.0
    %1196 = vmatpush1.xpose.msra.mxu0 0.0
    %1197 = vmatprep.subr.mxu0 0.0
    %1198 = vmatpush1.xpose.msra.mxu0 0.0
    %1199 = vmatprep.subr.mxu0 0.0
    %1200 = vmatpush1.xpose.msra.mxu0 0.0
    %1201 = vmatprep.subr.mxu0 0.0
    %1202 = vmatpush1.xpose.msra.mxu0 0.0
    %1203 = vmatprep.subr.mxu0 0.0
    %1204 = vmatpush1.xpose.msra.mxu0 0.0
    %1205 = vmatprep.subr.mxu0 0.0
    %1206 = vmatpush1.xpose.msra.mxu0 0.0
    %1207 = vmatprep.subr.mxu0 0.0
    %1208 = vmatpush1.xpose.msra.mxu0 0.0
    %1209 = vmatprep.subr.mxu0 0.0
    %1210 = vmatpush1.xpose.msra.mxu0 0.0
    %1211 = vmatprep.subr.mxu0 0.0
    %1212 = vmatpush1.xpose.msra.mxu0 0.0
    %1213 = vmatprep.subr.mxu0 0.0
    %1214 = vmatpush1.xpose.msra.mxu0 0.0
    %1215 = vmatprep.subr.mxu0 0.0
    %1216 = vmatpush1.xpose.msra.mxu0 0.0
    %1217 = vmatprep.subr.mxu0 0.0
    %1218 = vmatpush1.xpose.msra.mxu0 0.0
    %1219 = vmatprep.subr.mxu0 0.0
    %1220 = vmatpush1.xpose.msra.mxu0 0.0
    %1221 = vmatprep.subr.mxu0 0.0
    %1222 = vmatpush1.xpose.msra.mxu0 0.0
    %1223 = vmatprep.subr.mxu0 0.0
    %1224 = vmatpush1.xpose.msra.mxu0 0.0
    %1225 = vmatprep.subr.mxu0 0.0
    %1226 = vmatpush1.xpose.msra.mxu0 0.0
    %1227 = vmatprep.subr.mxu0 0.0
    %1228 = vmatpush1.xpose.msra.mxu0 0.0
    %1229 = vmatprep.subr.mxu0 0.0
    %1230 = vmatpush1.xpose.msra.mxu0 0.0
    %1231 = vmatprep.subr.mxu0 0.0
    %1232 = vmatpush1.xpose.msra.mxu0 0.0
    %1233 = vmatprep.subr.mxu0 0.0
    %1234 = vmatpush1.xpose.msra.mxu0 0.0
    %1235 = vmatprep.subr.mxu0 0.0
    %1236 = vmatpush1.xpose.msra.mxu0 0.0
    %1237 = vmatprep.subr.mxu0 0.0
    %1238 = vmatpush1.xpose.msra.mxu0 0.0
    %1239 = vmatprep.subr.mxu0 0.0
    %1240 = vmatpush1.xpose.msra.mxu0 0.0
    %1241 = vmatprep.mubr.f32.mxu0 0.0
    %1242 = vmatmul.mubr.f32.gmra.mrb[0].mxu0 %v306
    %v1243 = vpop.f32.mrb[0].mxu0
    %v1244 = vadd.f32 0.0, %v1243
    %v1245 = vpop.f32.mrb[0].mxu0
    %1246 = vdwg.mxu0
    %v1247 = vsel %vm781, %v1244, -inf
    %1248 = vmax.xlane.f32.xlu0 %v1247
    %v1249 = vpop.xlane.xlu0 %1248
    %v1250 = vsub.f32 %v1244, %v1249
    %v1251 = vmul.f32 %v1250, 1.442695
    %v1252 = vpow.pop %v1251
    %v1253 = vsel %vm781, %v1252, 0.0
    %1254 = vadd.xlane.f32.xlu0 %v1253
    %v1255 = vpop.xlane.xlu0 %1254
    %v1257 = vsel %vm781, %v1252, 0
    %1259 = vmatprep.subr.mxu0 0.0
    %1260 = vmatpush1.msra.mxu0 %v691
    %1261 = vmatprep.subr.mxu0 0.0
    %1262 = vmatpush1.msra.mxu0 %v697
    %1263 = vmatprep.subr.mxu0 0.0
    %1264 = vmatpush1.msra.mxu0 0.0
    %1265 = vmatprep.subr.mxu0 0.0
    %1266 = vmatpush1.msra.mxu0 0.0
    %1267 = vmatprep.subr.mxu0 0.0
    %1268 = vmatpush1.msra.mxu0 0.0
    %1269 = vmatprep.subr.mxu0 0.0
    %1270 = vmatpush1.msra.mxu0 0.0
    %1271 = vmatprep.subr.mxu0 0.0
    %1272 = vmatpush1.msra.mxu0 0.0
    %1273 = vmatprep.subr.mxu0 0.0
    %1274 = vmatpush1.msra.mxu0 0.0
    %1275 = vmatprep.subr.mxu0 0.0
    %1276 = vmatpush1.msra.mxu0 0.0
    %1277 = vmatprep.subr.mxu0 0.0
    %1278 = vmatpush1.msra.mxu0 0.0
    %1279 = vmatprep.subr.mxu0 0.0
    %1280 = vmatpush1.msra.mxu0 0.0
    %1281 = vmatprep.subr.mxu0 0.0
    %1282 = vmatpush1.msra.mxu0 0.0
    %1283 = vmatprep.subr.mxu0 0.0
    %1284 = vmatpush1.msra.mxu0 0.0
    %1285 = vmatprep.subr.mxu0 0.0
    %1286 = vmatpush1.msra.mxu0 0.0
    %1287 = vmatprep.subr.mxu0 0.0
    %1288 = vmatpush1.msra.mxu0 0.0
    %1289 = vmatprep.subr.mxu0 0.0
    %1290 = vmatpush1.msra.mxu0 0.0
    %1291 = vmatprep.subr.mxu0 0.0
    %1292 = vmatpush1.msra.mxu0 0.0
    %1293 = vmatprep.subr.mxu0 0.0
    %1294 = vmatpush1.msra.mxu0 0.0
    %1295 = vmatprep.subr.mxu0 0.0
    %1296 = vmatpush1.msra.mxu0 0.0
    %1297 = vmatprep.subr.mxu0 0.0
    %1298 = vmatpush1.msra.mxu0 0.0
    %1299 = vmatprep.subr.mxu0 0.0
    %1300 = vmatpush1.msra.mxu0 0.0
    %1301 = vmatprep.subr.mxu0 0.0
    %1302 = vmatpush1.msra.mxu0 0.0
    %1303 = vmatprep.subr.mxu0 0.0
    %1304 = vmatpush1.msra.mxu0 0.0
    %1305 = vmatprep.subr.mxu0 0.0
    %1306 = vmatpush1.msra.mxu0 0.0
    %1307 = vmatprep.subr.mxu0 0.0
    %1308 = vmatpush1.msra.mxu0 0.0
    %1309 = vmatprep.subr.mxu0 0.0
    %1310 = vmatpush1.msra.mxu0 0.0
    %1311 = vmatprep.subr.mxu0 0.0
    %1312 = vmatpush1.msra.mxu0 0.0
    %1313 = vmatprep.subr.mxu0 0.0
    %1314 = vmatpush1.msra.mxu0 0.0
    %1315 = vmatprep.subr.mxu0 0.0
    %1316 = vmatpush1.msra.mxu0 0.0
    %1317 = vmatprep.subr.mxu0 0.0
    %1318 = vmatpush1.msra.mxu0 0.0
    %1319 = vmatprep.subr.mxu0 0.0
    %1320 = vmatpush1.msra.mxu0 0.0
    %1321 = vmatprep.subr.mxu0 0.0
    %1322 = vmatpush1.msra.mxu0 0.0
    %1323 = vmatprep.mubr.f32.mxu0 0.0
    %1324 = vmatmul.mubr.f32.gmra.mrb[0].mxu0 %v1257
    %v1325 = vpop.f32.mrb[0].mxu0
    %v1326 = vadd.f32 0.0, %v1325
    %v1327 = vpop.f32.mrb[0].mxu0
    %1328 = vdwg.mxu0
    %v1329 = vrcp.pop %v1255
    %v1330 = vmul.f32 %v1326, %v1329
    %1331 = vst [vmem:[#allocation2 + $0x18] sm:$0xff] %v1330
    %1332 = vmatprep.subr.mxu0 0.0
    %1333 = vmatpush1.xpose.msra.mxu0 %v418
    %1334 = vmatprep.subr.mxu0 0.0
    %1335 = vmatpush1.xpose.msra.mxu0 %v424
    %1336 = vmatprep.subr.mxu0 0.0
    %1337 = vmatpush1.xpose.msra.mxu0 0.0
    %1338 = vmatprep.subr.mxu0 0.0
    %1339 = vmatpush1.xpose.msra.mxu0 0.0
    %1340 = vmatprep.subr.mxu0 0.0
    %1341 = vmatpush1.xpose.msra.mxu0 0.0
    %1342 = vmatprep.subr.mxu0 0.0
    %1343 = vmatpush1.xpose.msra.mxu0 0.0
    %1344 = vmatprep.subr.mxu0 0.0
    %1345 = vmatpush1.xpose.msra.mxu0 0.0
    %1346 = vmatprep.subr.mxu0 0.0
    %1347 = vmatpush1.xpose.msra.mxu0 0.0
    %1348 = vmatprep.subr.mxu0 0.0
    %1349 = vmatpush1.xpose.msra.mxu0 0.0
    %1350 = vmatprep.subr.mxu0 0.0
    %1351 = vmatpush1.xpose.msra.mxu0 0.0
    %1352 = vmatprep.subr.mxu0 0.0
    %1353 = vmatpush1.xpose.msra.mxu0 0.0
    %1354 = vmatprep.subr.mxu0 0.0
    %1355 = vmatpush1.xpose.msra.mxu0 0.0
    %1356 = vmatprep.subr.mxu0 0.0
    %1357 = vmatpush1.xpose.msra.mxu0 0.0
    %1358 = vmatprep.subr.mxu0 0.0
    %1359 = vmatpush1.xpose.msra.mxu0 0.0
    %1360 = vmatprep.subr.mxu0 0.0
    %1361 = vmatpush1.xpose.msra.mxu0 0.0
    %1362 = vmatprep.subr.mxu0 0.0
    %1363 = vmatpush1.xpose.msra.mxu0 0.0
    %1364 = vmatprep.subr.mxu0 0.0
    %1365 = vmatpush1.xpose.msra.mxu0 0.0
    %1366 = vmatprep.subr.mxu0 0.0
    %1367 = vmatpush1.xpose.msra.mxu0 0.0
    %1368 = vmatprep.subr.mxu0 0.0
    %1369 = vmatpush1.xpose.msra.mxu0 0.0
    %1370 = vmatprep.subr.mxu0 0.0
    %1371 = vmatpush1.xpose.msra.mxu0 0.0
    %1372 = vmatprep.subr.mxu0 0.0
    %1373 = vmatpush1.xpose.msra.mxu0 0.0
    %1374 = vmatprep.subr.mxu0 0.0
    %1375 = vmatpush1.xpose.msra.mxu0 0.0
    %1376 = vmatprep.subr.mxu0 0.0
    %1377 = vmatpush1.xpose.msra.mxu0 0.0
    %1378 = vmatprep.subr.mxu0 0.0
    %1379 = vmatpush1.xpose.msra.mxu0 0.0
    %1380 = vmatprep.subr.mxu0 0.0
    %1381 = vmatpush1.xpose.msra.mxu0 0.0
    %1382 = vmatprep.subr.mxu0 0.0
    %1383 = vmatpush1.xpose.msra.mxu0 0.0
    %1384 = vmatprep.subr.mxu0 0.0
    %1385 = vmatpush1.xpose.msra.mxu0 0.0
    %1386 = vmatprep.subr.mxu0 0.0
    %1387 = vmatpush1.xpose.msra.mxu0 0.0
    %1388 = vmatprep.subr.mxu0 0.0
    %1389 = vmatpush1.xpose.msra.mxu0 0.0
    %1390 = vmatprep.subr.mxu0 0.0
    %1391 = vmatpush1.xpose.msra.mxu0 0.0
    %1392 = vmatprep.subr.mxu0 0.0
    %1393 = vmatpush1.xpose.msra.mxu0 0.0
    %1394 = vmatprep.subr.mxu0 0.0
    %1395 = vmatpush1.xpose.msra.mxu0 0.0
    %1396 = vmatprep.mubr.f32.mxu0 0.0
    %1397 = vmatmul.mubr.f32.gmra.mrb[0].mxu0 %v307
    %v1398 = vpop.f32.mrb[0].mxu0
    %v1399 = vadd.f32 0.0, %v1398
    %v1400 = vpop.f32.mrb[0].mxu0
    %1401 = vdwg.mxu0
    %v1402 = vsel %vm781, %v1399, -inf
    %1403 = vmax.xlane.f32.xlu0 %v1402
    %v1404 = vpop.xlane.xlu0 %1403
    %v1405 = vsub.f32 %v1399, %v1404
    %v1406 = vmul.f32 %v1405, 1.442695
    %v1407 = vpow.pop %v1406
    %v1408 = vsel %vm781, %v1407, 0.0
    %1409 = vadd.xlane.f32.xlu0 %v1408
    %v1410 = vpop.xlane.xlu0 %1409
    %v1412 = vsel %vm781, %v1407, 0
    %1414 = vmatprep.subr.mxu0 0.0
    %1415 = vmatpush1.msra.mxu0 %v612
    %1416 = vmatprep.subr.mxu0 0.0
    %1417 = vmatpush1.msra.mxu0 %v618
    %1418 = vmatprep.subr.mxu0 0.0
    %1419 = vmatpush1.msra.mxu0 0.0
    %1420 = vmatprep.subr.mxu0 0.0
    %1421 = vmatpush1.msra.mxu0 0.0
    %1422 = vmatprep.subr.mxu0 0.0
    %1423 = vmatpush1.msra.mxu0 0.0
    %1424 = vmatprep.subr.mxu0 0.0
    %1425 = vmatpush1.msra.mxu0 0.0
    %1426 = vmatprep.subr.mxu0 0.0
    %1427 = vmatpush1.msra.mxu0 0.0
    %1428 = vmatprep.subr.mxu0 0.0
    %1429 = vmatpush1.msra.mxu0 0.0
    %1430 = vmatprep.subr.mxu0 0.0
    %1431 = vmatpush1.msra.mxu0 0.0
    %1432 = vmatprep.subr.mxu0 0.0
    %1433 = vmatpush1.msra.mxu0 0.0
    %1434 = vmatprep.subr.mxu0 0.0
    %1435 = vmatpush1.msra.mxu0 0.0
    %1436 = vmatprep.subr.mxu0 0.0
    %1437 = vmatpush1.msra.mxu0 0.0
    %1438 = vmatprep.subr.mxu0 0.0
    %1439 = vmatpush1.msra.mxu0 0.0
    %1440 = vmatprep.subr.mxu0 0.0
    %1441 = vmatpush1.msra.mxu0 0.0
    %1442 = vmatprep.subr.mxu0 0.0
    %1443 = vmatpush1.msra.mxu0 0.0
    %1444 = vmatprep.subr.mxu0 0.0
    %1445 = vmatpush1.msra.mxu0 0.0
    %1446 = vmatprep.subr.mxu0 0.0
    %1447 = vmatpush1.msra.mxu0 0.0
    %1448 = vmatprep.subr.mxu0 0.0
    %1449 = vmatpush1.msra.mxu0 0.0
    %1450 = vmatprep.subr.mxu0 0.0
    %1451 = vmatpush1.msra.mxu0 0.0
    %1452 = vmatprep.subr.mxu0 0.0
    %1453 = vmatpush1.msra.mxu0 0.0
    %1454 = vmatprep.subr.mxu0 0.0
    %1455 = vmatpush1.msra.mxu0 0.0
    %1456 = vmatprep.subr.mxu0 0.0
    %1457 = vmatpush1.msra.mxu0 0.0
    %1458 = vmatprep.subr.mxu0 0.0
    %1459 = vmatpush1.msra.mxu0 0.0
    %1460 = vmatprep.subr.mxu0 0.0
    %1461 = vmatpush1.msra.mxu0 0.0
    %1462 = vmatprep.subr.mxu0 0.0
    %1463 = vmatpush1.msra.mxu0 0.0
    %1464 = vmatprep.subr.mxu0 0.0
    %1465 = vmatpush1.msra.mxu0 0.0
    %1466 = vmatprep.subr.mxu0 0.0
    %1467 = vmatpush1.msra.mxu0 0.0
    %1468 = vmatprep.subr.mxu0 0.0
    %1469 = vmatpush1.msra.mxu0 0.0
    %1470 = vmatprep.subr.mxu0 0.0
    %1471 = vmatpush1.msra.mxu0 0.0
    %1472 = vmatprep.subr.mxu0 0.0
    %1473 = vmatpush1.msra.mxu0 0.0
    %1474 = vmatprep.subr.mxu0 0.0
    %1475 = vmatpush1.msra.mxu0 0.0
    %1476 = vmatprep.subr.mxu0 0.0
    %1477 = vmatpush1.msra.mxu0 0.0
    %1478 = vmatprep.mubr.f32.mxu0 0.0
    %1479 = vmatmul.mubr.f32.gmra.mrb[0].mxu0 %v1412
    %v1480 = vpop.f32.mrb[0].mxu0
    %v1481 = vadd.f32 0.0, %v1480
    %v1482 = vpop.f32.mrb[0].mxu0
    %1483 = vdwg.mxu0
    %v1484 = vrcp.pop %v1410
    %v1485 = vmul.f32 %v1481, %v1484
    %1486 = vst [vmem:[#allocation2 + $0x20] sm:$0xff] %v1485
    %1487 = vmatprep.subr.mxu0 0.0
    %1488 = vmatpush1.xpose.msra.mxu0 %v420
    %1489 = vmatprep.subr.mxu0 0.0
    %1490 = vmatpush1.xpose.msra.mxu0 %v426
    %1491 = vmatprep.subr.mxu0 0.0
    %1492 = vmatpush1.xpose.msra.mxu0 0.0
    %1493 = vmatprep.subr.mxu0 0.0
    %1494 = vmatpush1.xpose.msra.mxu0 0.0
    %1495 = vmatprep.subr.mxu0 0.0
    %1496 = vmatpush1.xpose.msra.mxu0 0.0
    %1497 = vmatprep.subr.mxu0 0.0
    %1498 = vmatpush1.xpose.msra.mxu0 0.0
    %1499 = vmatprep.subr.mxu0 0.0
    %1500 = vmatpush1.xpose.msra.mxu0 0.0
    %1501 = vmatprep.subr.mxu0 0.0
    %1502 = vmatpush1.xpose.msra.mxu0 0.0
    %1503 = vmatprep.subr.mxu0 0.0
    %1504 = vmatpush1.xpose.msra.mxu0 0.0
    %1505 = vmatprep.subr.mxu0 0.0
    %1506 = vmatpush1.xpose.msra.mxu0 0.0
    %1507 = vmatprep.subr.mxu0 0.0
    %1508 = vmatpush1.xpose.msra.mxu0 0.0
    %1509 = vmatprep.subr.mxu0 0.0
    %1510 = vmatpush1.xpose.msra.mxu0 0.0
    %1511 = vmatprep.subr.mxu0 0.0
    %1512 = vmatpush1.xpose.msra.mxu0 0.0
    %1513 = vmatprep.subr.mxu0 0.0
    %1514 = vmatpush1.xpose.msra.mxu0 0.0
    %1515 = vmatprep.subr.mxu0 0.0
    %1516 = vmatpush1.xpose.msra.mxu0 0.0
    %1517 = vmatprep.subr.mxu0 0.0
    %1518 = vmatpush1.xpose.msra.mxu0 0.0
    %1519 = vmatprep.subr.mxu0 0.0
    %1520 = vmatpush1.xpose.msra.mxu0 0.0
    %1521 = vmatprep.subr.mxu0 0.0
    %1522 = vmatpush1.xpose.msra.mxu0 0.0
    %1523 = vmatprep.subr.mxu0 0.0
    %1524 = vmatpush1.xpose.msra.mxu0 0.0
    %1525 = vmatprep.subr.mxu0 0.0
    %1526 = vmatpush1.xpose.msra.mxu0 0.0
    %1527 = vmatprep.subr.mxu0 0.0
    %1528 = vmatpush1.xpose.msra.mxu0 0.0
    %1529 = vmatprep.subr.mxu0 0.0
    %1530 = vmatpush1.xpose.msra.mxu0 0.0
    %1531 = vmatprep.subr.mxu0 0.0
    %1532 = vmatpush1.xpose.msra.mxu0 0.0
    %1533 = vmatprep.subr.mxu0 0.0
    %1534 = vmatpush1.xpose.msra.mxu0 0.0
    %1535 = vmatprep.subr.mxu0 0.0
    %1536 = vmatpush1.xpose.msra.mxu0 0.0
    %1537 = vmatprep.subr.mxu0 0.0
    %1538 = vmatpush1.xpose.msra.mxu0 0.0
    %1539 = vmatprep.subr.mxu0 0.0
    %1540 = vmatpush1.xpose.msra.mxu0 0.0
    %1541 = vmatprep.subr.mxu0 0.0
    %1542 = vmatpush1.xpose.msra.mxu0 0.0
    %1543 = vmatprep.subr.mxu0 0.0
    %1544 = vmatpush1.xpose.msra.mxu0 0.0
    %1545 = vmatprep.subr.mxu0 0.0
    %1546 = vmatpush1.xpose.msra.mxu0 0.0
    %1547 = vmatprep.subr.mxu0 0.0
    %1548 = vmatpush1.xpose.msra.mxu0 0.0
    %1549 = vmatprep.subr.mxu0 0.0
    %1550 = vmatpush1.xpose.msra.mxu0 0.0
    %1551 = vmatprep.mubr.f32.mxu0 0.0
    %1552 = vmatmul.mubr.f32.gmra.mrb[0].mxu0 %v308
    %v1553 = vpop.f32.mrb[0].mxu0
    %v1554 = vadd.f32 0.0, %v1553
    %v1555 = vpop.f32.mrb[0].mxu0
    %1556 = vdwg.mxu0
    %v1557 = vsel %vm781, %v1554, -inf
    %1558 = vmax.xlane.f32.xlu0 %v1557
    %v1559 = vpop.xlane.xlu0 %1558
    %v1560 = vsub.f32 %v1554, %v1559
    %v1561 = vmul.f32 %v1560, 1.442695
    %v1562 = vpow.pop %v1561
    %v1563 = vsel %vm781, %v1562, 0.0
    %1564 = vadd.xlane.f32.xlu0 %v1563
    %v1565 = vpop.xlane.xlu0 %1564
    %v1567 = vsel %vm781, %v1562, 0
    %1569 = vmatprep.subr.mxu0 0.0
    %1570 = vmatpush1.msra.mxu0 %v614
    %1571 = vmatprep.subr.mxu0 0.0
    %1572 = vmatpush1.msra.mxu0 %v620
    %1573 = vmatprep.subr.mxu0 0.0
    %1574 = vmatpush1.msra.mxu0 0.0
    %1575 = vmatprep.subr.mxu0 0.0
    %1576 = vmatpush1.msra.mxu0 0.0
    %1577 = vmatprep.subr.mxu0 0.0
    %1578 = vmatpush1.msra.mxu0 0.0
    %1579 = vmatprep.subr.mxu0 0.0
    %1580 = vmatpush1.msra.mxu0 0.0
    %1581 = vmatprep.subr.mxu0 0.0
    %1582 = vmatpush1.msra.mxu0 0.0
    %1583 = vmatprep.subr.mxu0 0.0
    %1584 = vmatpush1.msra.mxu0 0.0
    %1585 = vmatprep.subr.mxu0 0.0
    %1586 = vmatpush1.msra.mxu0 0.0
    %1587 = vmatprep.subr.mxu0 0.0
    %1588 = vmatpush1.msra.mxu0 0.0
    %1589 = vmatprep.subr.mxu0 0.0
    %1590 = vmatpush1.msra.mxu0 0.0
    %1591 = vmatprep.subr.mxu0 0.0
    %1592 = vmatpush1.msra.mxu0 0.0
    %1593 = vmatprep.subr.mxu0 0.0
    %1594 = vmatpush1.msra.mxu0 0.0
    %1595 = vmatprep.subr.mxu0 0.0
    %1596 = vmatpush1.msra.mxu0 0.0
    %1597 = vmatprep.subr.mxu0 0.0
    %1598 = vmatpush1.msra.mxu0 0.0
    %1599 = vmatprep.subr.mxu0 0.0
    %1600 = vmatpush1.msra.mxu0 0.0
    %1601 = vmatprep.subr.mxu0 0.0
    %1602 = vmatpush1.msra.mxu0 0.0
    %1603 = vmatprep.subr.mxu0 0.0
    %1604 = vmatpush1.msra.mxu0 0.0
    %1605 = vmatprep.subr.mxu0 0.0
    %1606 = vmatpush1.msra.mxu0 0.0
    %1607 = vmatprep.subr.mxu0 0.0
    %1608 = vmatpush1.msra.mxu0 0.0
    %1609 = vmatprep.subr.mxu0 0.0
    %1610 = vmatpush1.msra.mxu0 0.0
    %1611 = vmatprep.subr.mxu0 0.0
    %1612 = vmatpush1.msra.mxu0 0.0
    %1613 = vmatprep.subr.mxu0 0.0
    %1614 = vmatpush1.msra.mxu0 0.0
    %1615 = vmatprep.subr.mxu0 0.0
    %1616 = vmatpush1.msra.mxu0 0.0
    %1617 = vmatprep.subr.mxu0 0.0
    %1618 = vmatpush1.msra.mxu0 0.0
    %1619 = vmatprep.subr.mxu0 0.0
    %1620 = vmatpush1.msra.mxu0 0.0
    %1621 = vmatprep.subr.mxu0 0.0
    %1622 = vmatpush1.msra.mxu0 0.0
    %1623 = vmatprep.subr.mxu0 0.0
    %1624 = vmatpush1.msra.mxu0 0.0
    %1625 = vmatprep.subr.mxu0 0.0
    %1626 = vmatpush1.msra.mxu0 0.0
    %1627 = vmatprep.subr.mxu0 0.0
    %1628 = vmatpush1.msra.mxu0 0.0
    %1629 = vmatprep.subr.mxu0 0.0
    %1630 = vmatpush1.msra.mxu0 0.0
    %1631 = vmatprep.subr.mxu0 0.0
    %1632 = vmatpush1.msra.mxu0 0.0
    %1633 = vmatprep.mubr.f32.mxu0 0.0
    %1634 = vmatmul.mubr.f32.gmra.mrb[0].mxu0 %v1567
    %v1635 = vpop.f32.mrb[0].mxu0
    %v1636 = vadd.f32 0.0, %v1635
    %v1637 = vpop.f32.mrb[0].mxu0
    %1638 = vdwg.mxu0
    %v1639 = vrcp.pop %v1565
    %v1640 = vmul.f32 %v1636, %v1639
    %1641 = vst [vmem:[#allocation2 + $0x28] sm:$0xff] %v1640
    %1642 = vmatprep.subr.mxu0 0.0
    %1643 = vmatpush1.xpose.msra.mxu0 %v507
    %1644 = vmatprep.subr.mxu0 0.0
    %1645 = vmatpush1.xpose.msra.mxu0 %v513
    %1646 = vmatprep.subr.mxu0 0.0
    %1647 = vmatpush1.xpose.msra.mxu0 0.0
    %1648 = vmatprep.subr.mxu0 0.0
    %1649 = vmatpush1.xpose.msra.mxu0 0.0
    %1650 = vmatprep.subr.mxu0 0.0
    %1651 = vmatpush1.xpose.msra.mxu0 0.0
    %1652 = vmatprep.subr.mxu0 0.0
    %1653 = vmatpush1.xpose.msra.mxu0 0.0
    %1654 = vmatprep.subr.mxu0 0.0
    %1655 = vmatpush1.xpose.msra.mxu0 0.0
    %1656 = vmatprep.subr.mxu0 0.0
    %1657 = vmatpush1.xpose.msra.mxu0 0.0
    %1658 = vmatprep.subr.mxu0 0.0
    %1659 = vmatpush1.xpose.msra.mxu0 0.0
    %1660 = vmatprep.subr.mxu0 0.0
    %1661 = vmatpush1.xpose.msra.mxu0 0.0
    %1662 = vmatprep.subr.mxu0 0.0
    %1663 = vmatpush1.xpose.msra.mxu0 0.0
    %1664 = vmatprep.subr.mxu0 0.0
    %1665 = vmatpush1.xpose.msra.mxu0 0.0
    %1666 = vmatprep.subr.mxu0 0.0
    %1667 = vmatpush1.xpose.msra.mxu0 0.0
    %1668 = vmatprep.subr.mxu0 0.0
    %1669 = vmatpush1.xpose.msra.mxu0 0.0
    %1670 = vmatprep.subr.mxu0 0.0
    %1671 = vmatpush1.xpose.msra.mxu0 0.0
    %1672 = vmatprep.subr.mxu0 0.0
    %1673 = vmatpush1.xpose.msra.mxu0 0.0
    %1674 = vmatprep.subr.mxu0 0.0
    %1675 = vmatpush1.xpose.msra.mxu0 0.0
    %1676 = vmatprep.subr.mxu0 0.0
    %1677 = vmatpush1.xpose.msra.mxu0 0.0
    %1678 = vmatprep.subr.mxu0 0.0
    %1679 = vmatpush1.xpose.msra.mxu0 0.0
    %1680 = vmatprep.subr.mxu0 0.0
    %1681 = vmatpush1.xpose.msra.mxu0 0.0
    %1682 = vmatprep.subr.mxu0 0.0
    %1683 = vmatpush1.xpose.msra.mxu0 0.0
    %1684 = vmatprep.subr.mxu0 0.0
    %1685 = vmatpush1.xpose.msra.mxu0 0.0
    %1686 = vmatprep.subr.mxu0 0.0
    %1687 = vmatpush1.xpose.msra.mxu0 0.0
    %1688 = vmatprep.subr.mxu0 0.0
    %1689 = vmatpush1.xpose.msra.mxu0 0.0
    %1690 = vmatprep.subr.mxu0 0.0
    %1691 = vmatpush1.xpose.msra.mxu0 0.0
    %1692 = vmatprep.subr.mxu0 0.0
    %1693 = vmatpush1.xpose.msra.mxu0 0.0
    %1694 = vmatprep.subr.mxu0 0.0
    %1695 = vmatpush1.xpose.msra.mxu0 0.0
    %1696 = vmatprep.subr.mxu0 0.0
    %1697 = vmatpush1.xpose.msra.mxu0 0.0
    %1698 = vmatprep.subr.mxu0 0.0
    %1699 = vmatpush1.xpose.msra.mxu0 0.0
    %1700 = vmatprep.subr.mxu0 0.0
    %1701 = vmatpush1.xpose.msra.mxu0 0.0
    %1702 = vmatprep.subr.mxu0 0.0
    %1703 = vmatpush1.xpose.msra.mxu0 0.0
    %1704 = vmatprep.subr.mxu0 0.0
    %1705 = vmatpush1.xpose.msra.mxu0 0.0
    %1706 = vmatprep.mubr.f32.mxu0 0.0
    %1707 = vmatmul.mubr.f32.gmra.mrb[0].mxu0 %v309
    %v1708 = vpop.f32.mrb[0].mxu0
    %v1709 = vadd.f32 0.0, %v1708
    %v1710 = vpop.f32.mrb[0].mxu0
    %1711 = vdwg.mxu0
    %v1712 = vsel %vm781, %v1709, -inf
    %1713 = vmax.xlane.f32.xlu0 %v1712
    %v1714 = vpop.xlane.xlu0 %1713
    %v1715 = vsub.f32 %v1709, %v1714
    %v1716 = vmul.f32 %v1715, 1.442695
    %v1717 = vpow.pop %v1716
    %v1718 = vsel %vm781, %v1717, 0.0
    %1719 = vadd.xlane.f32.xlu0 %v1718
    %v1720 = vpop.xlane.xlu0 %1719
    %v1722 = vsel %vm781, %v1717, 0
    %1724 = vmatprep.subr.mxu0 0.0
    %1725 = vmatpush1.msra.mxu0 %v701
    %1726 = vmatprep.subr.mxu0 0.0
    %1727 = vmatpush1.msra.mxu0 %v707
    %1728 = vmatprep.subr.mxu0 0.0
    %1729 = vmatpush1.msra.mxu0 0.0
    %1730 = vmatprep.subr.mxu0 0.0
    %1731 = vmatpush1.msra.mxu0 0.0
    %1732 = vmatprep.subr.mxu0 0.0
    %1733 = vmatpush1.msra.mxu0 0.0
    %1734 = vmatprep.subr.mxu0 0.0
    %1735 = vmatpush1.msra.mxu0 0.0
    %1736 = vmatprep.subr.mxu0 0.0
    %1737 = vmatpush1.msra.mxu0 0.0
    %1738 = vmatprep.subr.mxu0 0.0
    %1739 = vmatpush1.msra.mxu0 0.0
    %1740 = vmatprep.subr.mxu0 0.0
    %1741 = vmatpush1.msra.mxu0 0.0
    %1742 = vmatprep.subr.mxu0 0.0
    %1743 = vmatpush1.msra.mxu0 0.0
    %1744 = vmatprep.subr.mxu0 0.0
    %1745 = vmatpush1.msra.mxu0 0.0
    %1746 = vmatprep.subr.mxu0 0.0
    %1747 = vmatpush1.msra.mxu0 0.0
    %1748 = vmatprep.subr.mxu0 0.0
    %1749 = vmatpush1.msra.mxu0 0.0
    %1750 = vmatprep.subr.mxu0 0.0
    %1751 = vmatpush1.msra.mxu0 0.0
    %1752 = vmatprep.subr.mxu0 0.0
    %1753 = vmatpush1.msra.mxu0 0.0
    %1754 = vmatprep.subr.mxu0 0.0
    %1755 = vmatpush1.msra.mxu0 0.0
    %1756 = vmatprep.subr.mxu0 0.0
    %1757 = vmatpush1.msra.mxu0 0.0
    %1758 = vmatprep.subr.mxu0 0.0
    %1759 = vmatpush1.msra.mxu0 0.0
    %1760 = vmatprep.subr.mxu0 0.0
    %1761 = vmatpush1.msra.mxu0 0.0
    %1762 = vmatprep.subr.mxu0 0.0
    %1763 = vmatpush1.msra.mxu0 0.0
    %1764 = vmatprep.subr.mxu0 0.0
    %1765 = vmatpush1.msra.mxu0 0.0
    %1766 = vmatprep.subr.mxu0 0.0
    %1767 = vmatpush1.msra.mxu0 0.0
    %1768 = vmatprep.subr.mxu0 0.0
    %1769 = vmatpush1.msra.mxu0 0.0
    %1770 = vmatprep.subr.mxu0 0.0
    %1771 = vmatpush1.msra.mxu0 0.0
    %1772 = vmatprep.subr.mxu0 0.0
    %1773 = vmatpush1.msra.mxu0 0.0
    %1774 = vmatprep.subr.mxu0 0.0
    %1775 = vmatpush1.msra.mxu0 0.0
    %1776 = vmatprep.subr.mxu0 0.0
    %1777 = vmatpush1.msra.mxu0 0.0
    %1778 = vmatprep.subr.mxu0 0.0
    %1779 = vmatpush1.msra.mxu0 0.0
    %1780 = vmatprep.subr.mxu0 0.0
    %1781 = vmatpush1.msra.mxu0 0.0
    %1782 = vmatprep.subr.mxu0 0.0
    %1783 = vmatpush1.msra.mxu0 0.0
    %1784 = vmatprep.subr.mxu0 0.0
    %1785 = vmatpush1.msra.mxu0 0.0
    %1786 = vmatprep.subr.mxu0 0.0
    %1787 = vmatpush1.msra.mxu0 0.0
    %1788 = vmatprep.mubr.f32.mxu0 0.0
    %1789 = vmatmul.mubr.f32.gmra.mrb[0].mxu0 %v1722
    %v1790 = vpop.f32.mrb[0].mxu0
    %v1791 = vadd.f32 0.0, %v1790
    %v1792 = vpop.f32.mrb[0].mxu0
    %1793 = vdwg.mxu0
    %v1794 = vrcp.pop %v1720
    %v1795 = vmul.f32 %v1791, %v1794
    %1796 = vst [vmem:[#allocation2 + $0x30] sm:$0xff] %v1795
    %1797 = vmatprep.subr.mxu0 0.0
    %1798 = vmatpush1.xpose.msra.mxu0 %v509
    %1799 = vmatprep.subr.mxu0 0.0
    %1800 = vmatpush1.xpose.msra.mxu0 %v515
    %1801 = vmatprep.subr.mxu0 0.0
    %1802 = vmatpush1.xpose.msra.mxu0 0.0
    %1803 = vmatprep.subr.mxu0 0.0
    %1804 = vmatpush1.xpose.msra.mxu0 0.0
    %1805 = vmatprep.subr.mxu0 0.0
    %1806 = vmatpush1.xpose.msra.mxu0 0.0
    %1807 = vmatprep.subr.mxu0 0.0
    %1808 = vmatpush1.xpose.msra.mxu0 0.0
    %1809 = vmatprep.subr.mxu0 0.0
    %1810 = vmatpush1.xpose.msra.mxu0 0.0
    %1811 = vmatprep.subr.mxu0 0.0
    %1812 = vmatpush1.xpose.msra.mxu0 0.0
    %1813 = vmatprep.subr.mxu0 0.0
    %1814 = vmatpush1.xpose.msra.mxu0 0.0
    %1815 = vmatprep.subr.mxu0 0.0
    %1816 = vmatpush1.xpose.msra.mxu0 0.0
    %1817 = vmatprep.subr.mxu0 0.0
    %1818 = vmatpush1.xpose.msra.mxu0 0.0
    %1819 = vmatprep.subr.mxu0 0.0
    %1820 = vmatpush1.xpose.msra.mxu0 0.0
    %1821 = vmatprep.subr.mxu0 0.0
    %1822 = vmatpush1.xpose.msra.mxu0 0.0
    %1823 = vmatprep.subr.mxu0 0.0
    %1824 = vmatpush1.xpose.msra.mxu0 0.0
    %1825 = vmatprep.subr.mxu0 0.0
    %1826 = vmatpush1.xpose.msra.mxu0 0.0
    %1827 = vmatprep.subr.mxu0 0.0
    %1828 = vmatpush1.xpose.msra.mxu0 0.0
    %1829 = vmatprep.subr.mxu0 0.0
    %1830 = vmatpush1.xpose.msra.mxu0 0.0
    %1831 = vmatprep.subr.mxu0 0.0
    %1832 = vmatpush1.xpose.msra.mxu0 0.0
    %1833 = vmatprep.subr.mxu0 0.0
    %1834 = vmatpush1.xpose.msra.mxu0 0.0
    %1835 = vmatprep.subr.mxu0 0.0
    %1836 = vmatpush1.xpose.msra.mxu0 0.0
    %1837 = vmatprep.subr.mxu0 0.0
    %1838 = vmatpush1.xpose.msra.mxu0 0.0
    %1839 = vmatprep.subr.mxu0 0.0
    %1840 = vmatpush1.xpose.msra.mxu0 0.0
    %1841 = vmatprep.subr.mxu0 0.0
    %1842 = vmatpush1.xpose.msra.mxu0 0.0
    %1843 = vmatprep.subr.mxu0 0.0
    %1844 = vmatpush1.xpose.msra.mxu0 0.0
    %1845 = vmatprep.subr.mxu0 0.0
    %1846 = vmatpush1.xpose.msra.mxu0 0.0
    %1847 = vmatprep.subr.mxu0 0.0
    %1848 = vmatpush1.xpose.msra.mxu0 0.0
    %1849 = vmatprep.subr.mxu0 0.0
    %1850 = vmatpush1.xpose.msra.mxu0 0.0
    %1851 = vmatprep.subr.mxu0 0.0
    %1852 = vmatpush1.xpose.msra.mxu0 0.0
    %1853 = vmatprep.subr.mxu0 0.0
    %1854 = vmatpush1.xpose.msra.mxu0 0.0
    %1855 = vmatprep.subr.mxu0 0.0
    %1856 = vmatpush1.xpose.msra.mxu0 0.0
    %1857 = vmatprep.subr.mxu0 0.0
    %1858 = vmatpush1.xpose.msra.mxu0 0.0
    %1859 = vmatprep.subr.mxu0 0.0
    %1860 = vmatpush1.xpose.msra.mxu0 0.0
    %1861 = vmatprep.mubr.f32.mxu0 0.0
    %1862 = vmatmul.mubr.f32.gmra.mrb[0].mxu0 %v310
    %v1863 = vpop.f32.mrb[0].mxu0
    %v1864 = vadd.f32 0.0, %v1863
    %v1865 = vpop.f32.mrb[0].mxu0
    %1866 = vdwg.mxu0
    %v1867 = vsel %vm781, %v1864, -inf
    %1868 = vmax.xlane.f32.xlu0 %v1867
    %v1869 = vpop.xlane.xlu0 %1868
    %v1870 = vsub.f32 %v1864, %v1869
    %v1871 = vmul.f32 %v1870, 1.442695
    %v1872 = vpow.pop %v1871
    %v1873 = vsel %vm781, %v1872, 0.0
    %1874 = vadd.xlane.f32.xlu0 %v1873
    %v1875 = vpop.xlane.xlu0 %1874
    %v1877 = vsel %vm781, %v1872, 0
    %1879 = vmatprep.subr.mxu0 0.0
    %1880 = vmatpush1.msra.mxu0 %v703
    %1881 = vmatprep.subr.mxu0 0.0
    %1882 = vmatpush1.msra.mxu0 %v709
    %1883 = vmatprep.subr.mxu0 0.0
    %1884 = vmatpush1.msra.mxu0 0.0
    %1885 = vmatprep.subr.mxu0 0.0
    %1886 = vmatpush1.msra.mxu0 0.0
    %1887 = vmatprep.subr.mxu0 0.0
    %1888 = vmatpush1.msra.mxu0 0.0
    %1889 = vmatprep.subr.mxu0 0.0
    %1890 = vmatpush1.msra.mxu0 0.0
    %1891 = vmatprep.subr.mxu0 0.0
    %1892 = vmatpush1.msra.mxu0 0.0
    %1893 = vmatprep.subr.mxu0 0.0
    %1894 = vmatpush1.msra.mxu0 0.0
    %1895 = vmatprep.subr.mxu0 0.0
    %1896 = vmatpush1.msra.mxu0 0.0
    %1897 = vmatprep.subr.mxu0 0.0
    %1898 = vmatpush1.msra.mxu0 0.0
    %1899 = vmatprep.subr.mxu0 0.0
    %1900 = vmatpush1.msra.mxu0 0.0
    %1901 = vmatprep.subr.mxu0 0.0
    %1902 = vmatpush1.msra.mxu0 0.0
    %1903 = vmatprep.subr.mxu0 0.0
    %1904 = vmatpush1.msra.mxu0 0.0
    %1905 = vmatprep.subr.mxu0 0.0
    %1906 = vmatpush1.msra.mxu0 0.0
    %1907 = vmatprep.subr.mxu0 0.0
    %1908 = vmatpush1.msra.mxu0 0.0
    %1909 = vmatprep.subr.mxu0 0.0
    %1910 = vmatpush1.msra.mxu0 0.0
    %1911 = vmatprep.subr.mxu0 0.0
    %1912 = vmatpush1.msra.mxu0 0.0
    %1913 = vmatprep.subr.mxu0 0.0
    %1914 = vmatpush1.msra.mxu0 0.0
    %1915 = vmatprep.subr.mxu0 0.0
    %1916 = vmatpush1.msra.mxu0 0.0
    %1917 = vmatprep.subr.mxu0 0.0
    %1918 = vmatpush1.msra.mxu0 0.0
    %1919 = vmatprep.subr.mxu0 0.0
    %1920 = vmatpush1.msra.mxu0 0.0
    %1921 = vmatprep.subr.mxu0 0.0
    %1922 = vmatpush1.msra.mxu0 0.0
    %1923 = vmatprep.subr.mxu0 0.0
    %1924 = vmatpush1.msra.mxu0 0.0
    %1925 = vmatprep.subr.mxu0 0.0
    %1926 = vmatpush1.msra.mxu0 0.0
    %1927 = vmatprep.subr.mxu0 0.0
    %1928 = vmatpush1.msra.mxu0 0.0
    %1929 = vmatprep.subr.mxu0 0.0
    %1930 = vmatpush1.msra.mxu0 0.0
    %1931 = vmatprep.subr.mxu0 0.0
    %1932 = vmatpush1.msra.mxu0 0.0
    %1933 = vmatprep.subr.mxu0 0.0
    %1934 = vmatpush1.msra.mxu0 0.0
    %1935 = vmatprep.subr.mxu0 0.0
    %1936 = vmatpush1.msra.mxu0 0.0
    %1937 = vmatprep.subr.mxu0 0.0
    %1938 = vmatpush1.msra.mxu0 0.0
    %1939 = vmatprep.subr.mxu0 0.0
    %1940 = vmatpush1.msra.mxu0 0.0
    %1941 = vmatprep.subr.mxu0 0.0
    %1942 = vmatpush1.msra.mxu0 0.0
    %1943 = vmatprep.mubr.f32.mxu0 0.0
    %1944 = vmatmul.mubr.f32.gmra.mrb[0].mxu0 %v1877
    %v1945 = vpop.f32.mrb[0].mxu0
    %v1946 = vadd.f32 0.0, %v1945
    %v1947 = vpop.f32.mrb[0].mxu0
    %1948 = vdwg.mxu0
    %v1949 = vrcp.pop %v1875
    %v1950 = vmul.f32 %v1946, %v1949
    %1951 = vst [vmem:[#allocation2 + $0x38] sm:$0xff] %v1950
    %v1952 = vld [vmem:[#allocation2] sm:$0xff]
    %v1953 = vld [vmem:[#allocation2 + $0x8] sm:$0xff]
    %v1954 = vld [vmem:[#allocation2 + $0x10] sm:$0xff]
    %v1955 = vld [vmem:[#allocation2 + $0x18] sm:$0xff]
    %v1956 = vld [vmem:[#allocation2 + $0x20] sm:$0xff]
    %v1957 = vld [vmem:[#allocation2 + $0x28] sm:$0xff]
    %v1958 = vld [vmem:[#allocation2 + $0x30] sm:$0xff]
    %v1959 = vld [vmem:[#allocation2 + $0x38] sm:$0xff]
    %v1960 = vld [vmem:[#allocation12] sm:$0xff]
    %v1961 = vld [vmem:[#allocation12 + $0x8] sm:$0xff]
    %v1962 = vld [vmem:[#allocation12 + $0x10] sm:$0xff]
    %v1963 = vld [vmem:[#allocation12 + $0x18] sm:$0xff]
    %v1964 = vld [vmem:[#allocation12 + $0x20] sm:$0xff]
    %v1965 = vld [vmem:[#allocation12 + $0x28] sm:$0xff]
    %v1966 = vld [vmem:[#allocation12 + $0x30] sm:$0xff]
    %v1967 = vld [vmem:[#allocation12 + $0x38] sm:$0xff]
    %v1968 = vld [vmem:[#allocation12 + $0x40] sm:$0xff]
    %v1969 = vld [vmem:[#allocation12 + $0x48] sm:$0xff]
    %v1970 = vld [vmem:[#allocation12 + $0x50] sm:$0xff]
    %v1971 = vld [vmem:[#allocation12 + $0x58] sm:$0xff]
    %v1972 = vld [vmem:[#allocation12 + $0x60] sm:$0xff]
    %v1973 = vld [vmem:[#allocation12 + $0x68] sm:$0xff]
    %v1974 = vld [vmem:[#allocation12 + $0x70] sm:$0xff]
    %v1975 = vld [vmem:[#allocation12 + $0x78] sm:$0xff]
    %v1976 = vld [vmem:[#allocation12 + $0x80] sm:$0xff]
    %v1977 = vld [vmem:[#allocation12 + $0x88] sm:$0xff]
    %v1978 = vld [vmem:[#allocation12 + $0x90] sm:$0xff]
    %v1979 = vld [vmem:[#allocation12 + $0x98] sm:$0xff]
    %v1980 = vld [vmem:[#allocation12 + $0xa0] sm:$0xff]
    %v1981 = vld [vmem:[#allocation12 + $0xa8] sm:$0xff]
    %v1982 = vld [vmem:[#allocation12 + $0xb0] sm:$0xff]
    %v1983 = vld [vmem:[#allocation12 + $0xb8] sm:$0xff]
    %v1984 = vld [vmem:[#allocation12 + $0xc0] sm:$0xff]
    %v1985 = vld [vmem:[#allocation12 + $0xc8] sm:$0xff]
    %v1986 = vld [vmem:[#allocation12 + $0xd0] sm:$0xff]
    %v1987 = vld [vmem:[#allocation12 + $0xd8] sm:$0xff]
    %v1988 = vld [vmem:[#allocation12 + $0xe0] sm:$0xff]
    %v1989 = vld [vmem:[#allocation12 + $0xe8] sm:$0xff]
    %v1990 = vld [vmem:[#allocation12 + $0xf0] sm:$0xff]
    %v1991 = vld [vmem:[#allocation12 + $0xf8] sm:$0xff]
    %v1992 = vld [vmem:[#allocation12 + $0x100] sm:$0xff]
    %v1993 = vld [vmem:[#allocation12 + $0x108] sm:$0xff]
    %v1994 = vld [vmem:[#allocation12 + $0x110] sm:$0xff]
    %v1995 = vld [vmem:[#allocation12 + $0x118] sm:$0xff]
    %v1996 = vld [vmem:[#allocation12 + $0x120] sm:$0xff]
    %v1997 = vld [vmem:[#allocation12 + $0x128] sm:$0xff]
    %v1998 = vld [vmem:[#allocation12 + $0x130] sm:$0xff]
    %v1999 = vld [vmem:[#allocation12 + $0x138] sm:$0xff]
    %v2000 = vld [vmem:[#allocation12 + $0x140] sm:$0xff]
    %v2001 = vld [vmem:[#allocation12 + $0x148] sm:$0xff]
    %v2002 = vld [vmem:[#allocation12 + $0x150] sm:$0xff]
    %v2003 = vld [vmem:[#allocation12 + $0x158] sm:$0xff]
    %v2004 = vld [vmem:[#allocation12 + $0x160] sm:$0xff]
    %v2005 = vld [vmem:[#allocation12 + $0x168] sm:$0xff]
    %v2006 = vld [vmem:[#allocation12 + $0x170] sm:$0xff]
    %v2007 = vld [vmem:[#allocation12 + $0x178] sm:$0xff]
    %v2008 = vld [vmem:[#allocation12 + $0x180] sm:$0xff]
    %v2009 = vld [vmem:[#allocation12 + $0x188] sm:$0xff]
    %v2010 = vld [vmem:[#allocation12 + $0x190] sm:$0xff]
    %v2011 = vld [vmem:[#allocation12 + $0x198] sm:$0xff]
    %v2012 = vld [vmem:[#allocation12 + $0x1a0] sm:$0xff]
    %v2013 = vld [vmem:[#allocation12 + $0x1a8] sm:$0xff]
    %v2014 = vld [vmem:[#allocation12 + $0x1b0] sm:$0xff]
    %v2015 = vld [vmem:[#allocation12 + $0x1b8] sm:$0xff]
    %v2016 = vld [vmem:[#allocation12 + $0x1c0] sm:$0xff]
    %v2017 = vld [vmem:[#allocation12 + $0x1c8] sm:$0xff]
    %v2018 = vld [vmem:[#allocation12 + $0x1d0] sm:$0xff]
    %v2019 = vld [vmem:[#allocation12 + $0x1d8] sm:$0xff]
    %v2020 = vld [vmem:[#allocation12 + $0x1e0] sm:$0xff]
    %v2021 = vld [vmem:[#allocation12 + $0x1e8] sm:$0xff]
    %v2022 = vld [vmem:[#allocation12 + $0x1f0] sm:$0xff]
    %v2023 = vld [vmem:[#allocation12 + $0x1f8] sm:$0xff]
    %v2024 = vld [vmem:[#allocation14] sm:$0x1]
    %v2026 = vlaneseq
    %v2027 = vshrl.u32 %v2026, 7
    %v2028 = vsub.s32 0, %v2027
    %v2029 = vrot.slane %v2024, %v2028
    %2031 = vmatprep.subr.mxu0 0.0
    %2032 = vmatpush1.msra.mxu0 %v1960
    %2033 = vmatprep.subr.mxu0 0.0
    %2034 = vmatpush1.msra.mxu0 %v1961
    %2035 = vmatprep.subr.mxu0 0.0
    %2036 = vmatpush1.msra.mxu0 %v1962
    %2037 = vmatprep.subr.mxu0 0.0
    %2038 = vmatpush1.msra.mxu0 %v1963
    %2039 = vmatprep.subr.mxu0 0.0
    %2040 = vmatpush1.msra.mxu0 %v1964
    %2041 = vmatprep.subr.mxu0 0.0
    %2042 = vmatpush1.msra.mxu0 %v1965
    %2043 = vmatprep.subr.mxu0 0.0
    %2044 = vmatpush1.msra.mxu0 %v1966
    %2045 = vmatprep.subr.mxu0 0.0
    %2046 = vmatpush1.msra.mxu0 %v1967
    %2047 = vmatprep.subr.mxu0 0.0
    %2048 = vmatpush1.msra.mxu0 %v1968
    %2049 = vmatprep.subr.mxu0 0.0
    %2050 = vmatpush1.msra.mxu0 %v1969
    %2051 = vmatprep.subr.mxu0 0.0
    %2052 = vmatpush1.msra.mxu0 %v1970
    %2053 = vmatprep.subr.mxu0 0.0
    %2054 = vmatpush1.msra.mxu0 %v1971
    %2055 = vmatprep.subr.mxu0 0.0
    %2056 = vmatpush1.msra.mxu0 %v1972
    %2057 = vmatprep.subr.mxu0 0.0
    %2058 = vmatpush1.msra.mxu0 %v1973
    %2059 = vmatprep.subr.mxu0 0.0
    %2060 = vmatpush1.msra.mxu0 %v1974
    %2061 = vmatprep.subr.mxu0 0.0
    %2062 = vmatpush1.msra.mxu0 %v1975
    %2063 = vmatprep.subr.mxu0 0.0
    %2064 = vmatpush1.msra.mxu0 %v1976
    %2065 = vmatprep.subr.mxu0 0.0
    %2066 = vmatpush1.msra.mxu0 %v1977
    %2067 = vmatprep.subr.mxu0 0.0
    %2068 = vmatpush1.msra.mxu0 %v1978
    %2069 = vmatprep.subr.mxu0 0.0
    %2070 = vmatpush1.msra.mxu0 %v1979
    %2071 = vmatprep.subr.mxu0 0.0
    %2072 = vmatpush1.msra.mxu0 %v1980
    %2073 = vmatprep.subr.mxu0 0.0
    %2074 = vmatpush1.msra.mxu0 %v1981
    %2075 = vmatprep.subr.mxu0 0.0
    %2076 = vmatpush1.msra.mxu0 %v1982
    %2077 = vmatprep.subr.mxu0 0.0
    %2078 = vmatpush1.msra.mxu0 %v1983
    %2079 = vmatprep.subr.mxu0 0.0
    %2080 = vmatpush1.msra.mxu0 %v1984
    %2081 = vmatprep.subr.mxu0 0.0
    %2082 = vmatpush1.msra.mxu0 %v1985
    %2083 = vmatprep.subr.mxu0 0.0
    %2084 = vmatpush1.msra.mxu0 %v1986
    %2085 = vmatprep.subr.mxu0 0.0
    %2086 = vmatpush1.msra.mxu0 %v1987
    %2087 = vmatprep.subr.mxu0 0.0
    %2088 = vmatpush1.msra.mxu0 %v1988
    %2089 = vmatprep.subr.mxu0 0.0
    %2090 = vmatpush1.msra.mxu0 %v1989
    %2091 = vmatprep.subr.mxu0 0.0
    %2092 = vmatpush1.msra.mxu0 %v1990
    %2093 = vmatprep.subr.mxu0 0.0
    %2094 = vmatpush1.msra.mxu0 %v1991
    %2095 = vmatprep.mubr.f32.mxu0 %v1953
    %2096 = vmatmul.mubr.f32.gmra.mrb[0].mxu0 %v1952
    %v2097 = vpop.f32.mrb[0].mxu0
    %v2098 = vadd.f32 %v2029, %v2097
    %v2099 = vpop.f32.mrb[0].mxu0
    %2100 = vmatprep.mubr.f32.mxu0 %v1957
    %2101 = vmatmul.mubr.f32.gmra.mrb[0].mxu0 %v1956
    %v2102 = vpop.f32.mrb[0].mxu0
    %v2103 = vadd.f32 %v2029, %v2102
    %v2104 = vpop.f32.mrb[0].mxu0
    %2105 = vdwg.mxu0
    %2106 = vmatprep.subr.mxu0 0.0
    %2107 = vmatpush1.msra.mxu0 %v1992
    %2108 = vmatprep.subr.mxu0 0.0
    %2109 = vmatpush1.msra.mxu0 %v1993
    %2110 = vmatprep.subr.mxu0 0.0
    %2111 = vmatpush1.msra.mxu0 %v1994
    %2112 = vmatprep.subr.mxu0 0.0
    %2113 = vmatpush1.msra.mxu0 %v1995
    %2114 = vmatprep.subr.mxu0 0.0
    %2115 = vmatpush1.msra.mxu0 %v1996
    %2116 = vmatprep.subr.mxu0 0.0
    %2117 = vmatpush1.msra.mxu0 %v1997
    %2118 = vmatprep.subr.mxu0 0.0
    %2119 = vmatpush1.msra.mxu0 %v1998
    %2120 = vmatprep.subr.mxu0 0.0
    %2121 = vmatpush1.msra.mxu0 %v1999
    %2122 = vmatprep.subr.mxu0 0.0
    %2123 = vmatpush1.msra.mxu0 %v2000
    %2124 = vmatprep.subr.mxu0 0.0
    %2125 = vmatpush1.msra.mxu0 %v2001
    %2126 = vmatprep.subr.mxu0 0.0
    %2127 = vmatpush1.msra.mxu0 %v2002
    %2128 = vmatprep.subr.mxu0 0.0
    %2129 = vmatpush1.msra.mxu0 %v2003
    %2130 = vmatprep.subr.mxu0 0.0
    %2131 = vmatpush1.msra.mxu0 %v2004
    %2132 = vmatprep.subr.mxu0 0.0
    %2133 = vmatpush1.msra.mxu0 %v2005
    %2134 = vmatprep.subr.mxu0 0.0
    %2135 = vmatpush1.msra.mxu0 %v2006
    %2136 = vmatprep.subr.mxu0 0.0
    %2137 = vmatpush1.msra.mxu0 %v2007
    %2138 = vmatprep.subr.mxu0 0.0
    %2139 = vmatpush1.msra.mxu0 %v2008
    %2140 = vmatprep.subr.mxu0 0.0
    %2141 = vmatpush1.msra.mxu0 %v2009
    %2142 = vmatprep.subr.mxu0 0.0
    %2143 = vmatpush1.msra.mxu0 %v2010
    %2144 = vmatprep.subr.mxu0 0.0
    %2145 = vmatpush1.msra.mxu0 %v2011
    %2146 = vmatprep.subr.mxu0 0.0
    %2147 = vmatpush1.msra.mxu0 %v2012
    %2148 = vmatprep.subr.mxu0 0.0
    %2149 = vmatpush1.msra.mxu0 %v2013
    %2150 = vmatprep.subr.mxu0 0.0
    %2151 = vmatpush1.msra.mxu0 %v2014
    %2152 = vmatprep.subr.mxu0 0.0
    %2153 = vmatpush1.msra.mxu0 %v2015
    %2154 = vmatprep.subr.mxu0 0.0
    %2155 = vmatpush1.msra.mxu0 %v2016
    %2156 = vmatprep.subr.mxu0 0.0
    %2157 = vmatpush1.msra.mxu0 %v2017
    %2158 = vmatprep.subr.mxu0 0.0
    %2159 = vmatpush1.msra.mxu0 %v2018
    %2160 = vmatprep.subr.mxu0 0.0
    %2161 = vmatpush1.msra.mxu0 %v2019
    %2162 = vmatprep.subr.mxu0 0.0
    %2163 = vmatpush1.msra.mxu0 %v2020
    %2164 = vmatprep.subr.mxu0 0.0
    %2165 = vmatpush1.msra.mxu0 %v2021
    %2166 = vmatprep.subr.mxu0 0.0
    %2167 = vmatpush1.msra.mxu0 %v2022
    %2168 = vmatprep.subr.mxu0 0.0
    %2169 = vmatpush1.msra.mxu0 %v2023
    %2170 = vmatprep.mubr.f32.mxu0 %v1955
    %2171 = vmatmul.mubr.f32.gmra.mrb[0].mxu0 %v1954
    %v2172 = vpop.f32.mrb[0].mxu0
    %v2173 = vadd.f32 %v2098, %v2172
    %v2174 = vpop.f32.mrb[0].mxu0
    %2175 = vmatprep.mubr.f32.mxu0 %v1959
    %2176 = vmatmul.mubr.f32.gmra.mrb[0].mxu0 %v1958
    %v2177 = vpop.f32.mrb[0].mxu0
    %v2178 = vadd.f32 %v2103, %v2177
    %v2179 = vpop.f32.mrb[0].mxu0
    %2180 = vdwg.mxu0
    %2181 = vst [vmem:[#allocation15] sm:$0xff] %v2173
    %2182 = vst [vmem:[#allocation15 + $0x8] sm:$0xff] %v2178
    // Predicated region
    $region58: #{tpu_custom_call.1} parent=1 // pred_check
      _
    $region59: #{tpu_custom_call.1} parent=1 // pred_check_branch
      %2184 = sbr.rel (0) target = $region61
    $region60: #{tpu_custom_call.1} parent=1 // pred_region
      %s2186 = ssub.s32 256, 256
      %2187 = vsyncadd [#allocation5], %s2186
      %s2188 = sshll.u32 [#allocation15], 4
      %s2189 = int_to_ptr.vmem [resolvable:$true] %s2188
      %2194 = dma.vmem_to_hbm [thread:$0]  %s2189, 256, %s7, [#allocation5], 128, 128, 8
    $region61: #{tpu_custom_call.1} parent=1 // pred_fallthru
      _
    // Predicated region
    $region62: #{tpu_custom_call.1} parent=1 // pred_check
      _
    $region63: #{tpu_custom_call.1} parent=1 // pred_check_branch
      %2196 = sbr.rel (0) target = $region65
    $region64: #{tpu_custom_call.1} parent=1 // pred_region
      %2197 = dma.done [#allocation5], 256
    $region65: #{tpu_custom_call.1} parent=1 // pred_fallthru
      _
    %2198 = vsyncpa [#allocation4], 1
    %2199 = vsyncpa [#allocation7], 1
    %2200 = vsyncpa [#allocation10], 1
    %2201 = vsyncpa [#allocation13], 1
    %2202 = vsyncpa [#allocation5], 1

</llo_original>
